<compile_context>
chip_gen: v6e
topology: v6e:2x2x1
jax: 0.10.0
libtpu: 0.0.40
codegen_flags: <defaults>
</compile_context>

<pallas_src>
import jax
import jax.numpy as jnp
from jax.experimental import pallas as pl
from jax.experimental.pallas import tpu as pltpu


def _round_up(x, m):
    return ((x + m - 1) // m) * m


def _make_mc_head_kernel(rows, group, e_chunk):
    """Builds the kernel with static chunk geometry baked in."""
    n_groups = rows // group

    def kernel(rowoff_ref, h_hbm, w_ref, bias_ref, out_ref, x_vmem, sems):
        # rowoff_ref: SMEM (n_chunks*ROWS,) int32  (scalar prefetch; flat row offsets)
        # h_hbm     : HBM  (B*C*S, E) native dtype (pl.ANY -> raw ref, manual DMA)
        # w_ref     : VMEM (1, E) f32              (lane-dense weight row)
        # bias_ref  : VMEM (1, 1) f32
        # out_ref   : VMEM (ROWS, 1) f32 block     (this chunk's logits, sublane layout)
        # x_vmem    : VMEM (ROWS, E) native dtype  (gather destination)
        # sems      : DMA semaphores, shape (ROWS // GROUP,)
        E = x_vmem.shape[1]
        base = pl.program_id(0) * rows

        # Issue every row-gather DMA for this chunk up front; group g's copies
        # all signal sems[g], so group g can be waited (and reduced) while the
        # later groups' DMAs are still in flight.
        copies = []
        for g in range(n_groups):
            grp = []
            for r in range(group):
                i = g * group + r
                row = rowoff_ref[base + i]            # dynamic flat row offset
                cp = pltpu.make_async_copy(
                    h_hbm.at[pl.ds(row, 1), :],       # (1, E) source row in HBM
                    x_vmem.at[pl.ds(i, 1), :],        # (1, E) destination slot
                    sems.at[g],
                )
                cp.start()
                grp.append(cp)
            copies.append(grp)

        bias = bias_ref[...]                          # (1, 1)

        # Per-group: wait its DMAs, then Linear(E, 1) as VPU multiply + lane
        # reduce, accumulating over E in <=e_chunk-lane slabs (bounded vregs).
        for g in range(n_groups):
            for cp in copies[g]:
                cp.wait()
            r0 = g * group
            acc = jnp.zeros((group, 1), jnp.float32)
            k0 = 0
            while k0 < E:
                kw = min(e_chunk, E - k0)
                xk = x_vmem[pl.ds(r0, group), pl.ds(k0, kw)].astype(jnp.float32)
                wk = w_ref[:, pl.ds(k0, kw)]          # (1, kw), broadcasts over rows
                acc = acc + jnp.sum(xk * wk, axis=-1, keepdims=True)
                k0 += kw
            out_ref[pl.ds(r0, group), :] = (acc + bias).astype(out_ref.dtype)

    return kernel


def gpt2_multiple_choice_head(hidden_states, mc_token_ids, weight, bias,
                              *, rows_per_chunk=128, group=8, e_chunk=512):
    """hidden_states: (B, C, S, E) float (kept in native dtype, no f32 copy);
    mc_token_ids: (B, C) int; weight: (1, E) (PyTorch Linear layout); bias: (1,)."""
    B, C, S, E = hidden_states.shape
    BC = B * C

    # Chunk geometry: ROWS rows per grid step (multiple of `group`), padded total.
    rows = min(_round_up(rows_per_chunk, group), _round_up(BC, group))
    n_chunks = -(-BC // rows)
    n_rows_pad = n_chunks * rows

    h_flat = hidden_states.reshape(BC * S, E)          # metadata reshape, no copy

    # Clamp ids (take_along_axis semantics; no OOB DMA possible) and precompute
    # flat row offsets into h_flat; pad to the chunked extent (pad rows read row
    # 0 harmlessly and their outputs are discarded by the wrapper slice).
    ids = jnp.clip(mc_token_ids.reshape(BC).astype(jnp.int32), 0, S - 1)
    row_off = jnp.arange(BC, dtype=jnp.int32) * S + ids
    row_off = jnp.pad(row_off, (0, n_rows_pad - BC))   # 1-D SMEM prefetch

    w_row = weight.astype(jnp.float32).reshape(1, E)   # tiny; lane-dense
    bias2d = bias.astype(jnp.float32).reshape(1, 1)

    kernel = _make_mc_head_kernel(rows, group, e_chunk)

    grid_spec = pltpu.PrefetchScalarGridSpec(
        num_scalar_prefetch=1,                         # row offsets -> SMEM
        grid=(n_chunks,),
        in_specs=[
            pl.BlockSpec(memory_space=pl.ANY),                 # hidden stays in HBM
            pl.BlockSpec((1, E), lambda i, ro: (0, 0)),        # weight row
            pl.BlockSpec((1, 1), lambda i, ro: (0, 0)),        # bias
        ],
        out_specs=pl.BlockSpec((rows, 1), lambda i, ro: (i, 0)),
        scratch_shapes=[
            pltpu.VMEM((rows, E), hidden_states.dtype),        # gathered rows
            pltpu.SemaphoreType.DMA((rows // group,)),         # per-group sems
        ],
    )

    out = pl.pallas_call(
        kernel,
        out_shape=jax.ShapeDtypeStruct((n_rows_pad, 1), jnp.float32),
        grid_spec=grid_spec,
        compiler_params=pltpu.CompilerParams(
            dimension_semantics=("parallel",),          # chunks are independent (v7x dual-TC)
        ),
    )(row_off, h_flat, w_row, bias2d)

    return out[:BC, 0].reshape(B, C)


def _reference(hidden_states, mc_token_ids, weight, bias):
    # Pure-JAX mirror of the PyTorch forward.
    idx = mc_token_ids[:, :, None, None].astype(jnp.int32)           # (B, C, 1, 1)
    idx = jnp.broadcast_to(idx, idx.shape[:3] + (hidden_states.shape[-1],))
    gathered = jnp.take_along_axis(hidden_states, idx, axis=2)       # (B, C, 1, E)
    mc_h = jnp.squeeze(gathered, axis=2)                             # (B, C, E)
    logits = mc_h @ weight.T + bias                                  # (B, C, 1)
    return jnp.squeeze(logits, axis=-1)                              # (B, C)


if __name__ == "__main__":
    B, C, S, E = 4, 3, 16, 64  # batch, num_choices, seq_len, n_embd

    key = jax.random.PRNGKey(0)
    k_h, k_ids, k_w, k_b = jax.random.split(key, 4)

    hidden_states = jax.random.normal(k_h, (B, C, S, E), dtype=jnp.float32)
    mc_token_ids = jax.random.randint(k_ids, (B, C), 0, S, dtype=jnp.int32)

    # nn.Linear(n_embd, 1): weight (1, E) ~ N(0, 0.02), bias (1,) ~ N(0, 1)
    weight = 0.02 * jax.random.normal(k_w, (1, E), dtype=jnp.float32)
    bias = jax.random.normal(k_b, (1,), dtype=jnp.float32)

    out = gpt2_multiple_choice_head(hidden_states, mc_token_ids, weight, bias)
    out = jax.block_until_ready(out)

    expected = _reference(hidden_states, mc_token_ids, weight, bias)
    assert out.shape == (B, C)
    assert jnp.allclose(out, expected, atol=1e-5, rtol=1e-5), (out, expected)

    print("KERNEL_OK")
</pallas_src>

<mosaic_0001>
module attributes {stable_mosaic.version = 11 : i64} {
  func.func @kernel(%arg0: i32, %arg1: memref<16xi32, #tpu.memory_space<smem>>, %arg2: memref<192x64xf32, #tpu.memory_space<any>>, %arg3: memref<1x64xf32, #tpu.memory_space<vmem>>, %arg4: memref<1x1xf32, #tpu.memory_space<vmem>>, %arg5: memref<16x1xf32, #tpu.memory_space<vmem>>, %arg6: memref<16x64xf32, #tpu.memory_space<vmem>>, %arg7: memref<2x!tpu.dma_semaphore, #tpu.memory_space<semaphore_mem>>) attributes {dimension_semantics = [#tpu.dimension_semantics<parallel>], iteration_bounds = array<i64: 1>, scalar_prefetch = 1 : i64, scratch_operands = 2 : i64, tpu.core_type = #tpu.core_type<tc>, window_params = [{}, {pipeline_mode = #tpu.pipeline_mode<synchronous>, transform_indices = @transform_1, window_bounds = array<i64: 1, 64>}, {pipeline_mode = #tpu.pipeline_mode<synchronous>, transform_indices = @transform_2, window_bounds = array<i64: 1, 1>}, {transform_indices = @transform_3, window_bounds = array<i64: 16, 1>}]} {
    %c16_i32 = arith.constant 16 : i32
    %0 = arith.muli %arg0, %c16_i32 : i32
    %c0_i32 = arith.constant 0 : i32
    %1 = arith.addi %0, %c0_i32 : i32
    %2 = arith.index_cast %1 : i32 to index
    %3 = memref.load %arg1[%2] : memref<16xi32, #tpu.memory_space<smem>>
    %c0_i32_0 = arith.constant 0 : i32
    %c0_i32_1 = arith.constant 0 : i32
    %4 = tpu.memref_slice %arg2[%3, %c0_i32_1] : memref<192x64xf32, #tpu.memory_space<any>> -> memref<1x64xf32, #tpu.memory_space<any>>
    %c0_i32_2 = arith.constant 0 : i32
    %c0_i32_3 = arith.constant 0 : i32
    %5 = tpu.memref_slice %arg6[%c0_i32_2, %c0_i32_3] : memref<16x64xf32, #tpu.memory_space<vmem>> -> memref<1x64xf32, #tpu.memory_space<vmem>>
    %6 = tpu.memref_slice %arg7[%c0_i32_0] : memref<2x!tpu.dma_semaphore, #tpu.memory_space<semaphore_mem>> -> memref<1x!tpu.dma_semaphore, #tpu.memory_space<semaphore_mem>>
    %7 = tpu.memref_squeeze %6 : memref<1x!tpu.dma_semaphore, #tpu.memory_space<semaphore_mem>> -> memref<!tpu.dma_semaphore, #tpu.memory_space<semaphore_mem>>
    tpu.enqueue_dma source(%4 : memref<1x64xf32, #tpu.memory_space<any>>) target(%5 : memref<1x64xf32, #tpu.memory_space<vmem>>) target_semaphore(%7 : memref<!tpu.dma_semaphore, #tpu.memory_space<semaphore_mem>>)
    %c1_i32 = arith.constant 1 : i32
    %8 = arith.addi %0, %c1_i32 : i32
    %9 = arith.index_cast %8 : i32 to index
    %10 = memref.load %arg1[%9] : memref<16xi32, #tpu.memory_space<smem>>
    %c0_i32_4 = arith.constant 0 : i32
    %c0_i32_5 = arith.constant 0 : i32
    %11 = tpu.memref_slice %arg2[%10, %c0_i32_5] : memref<192x64xf32, #tpu.memory_space<any>> -> memref<1x64xf32, #tpu.memory_space<any>>
    %c1_i32_6 = arith.constant 1 : i32
    %c0_i32_7 = arith.constant 0 : i32
    %12 = tpu.memref_slice %arg6[%c1_i32_6, %c0_i32_7] : memref<16x64xf32, #tpu.memory_space<vmem>> -> memref<1x64xf32, #tpu.memory_space<vmem>>
    %13 = tpu.memref_slice %arg7[%c0_i32_4] : memref<2x!tpu.dma_semaphore, #tpu.memory_space<semaphore_mem>> -> memref<1x!tpu.dma_semaphore, #tpu.memory_space<semaphore_mem>>
    %14 = tpu.memref_squeeze %13 : memref<1x!tpu.dma_semaphore, #tpu.memory_space<semaphore_mem>> -> memref<!tpu.dma_semaphore, #tpu.memory_space<semaphore_mem>>
    tpu.enqueue_dma source(%11 : memref<1x64xf32, #tpu.memory_space<any>>) target(%12 : memref<1x64xf32, #tpu.memory_space<vmem>>) target_semaphore(%14 : memref<!tpu.dma_semaphore, #tpu.memory_space<semaphore_mem>>)
    %c2_i32 = arith.constant 2 : i32
    %15 = arith.addi %0, %c2_i32 : i32
    %16 = arith.index_cast %15 : i32 to index
    %17 = memref.load %arg1[%16] : memref<16xi32, #tpu.memory_space<smem>>
    %c0_i32_8 = arith.constant 0 : i32
    %c0_i32_9 = arith.constant 0 : i32
    %18 = tpu.memref_slice %arg2[%17, %c0_i32_9] : memref<192x64xf32, #tpu.memory_space<any>> -> memref<1x64xf32, #tpu.memory_space<any>>
    %c2_i32_10 = arith.constant 2 : i32
    %c0_i32_11 = arith.constant 0 : i32
    %19 = tpu.memref_slice %arg6[%c2_i32_10, %c0_i32_11] : memref<16x64xf32, #tpu.memory_space<vmem>> -> memref<1x64xf32, #tpu.memory_space<vmem>>
    %20 = tpu.memref_slice %arg7[%c0_i32_8] : memref<2x!tpu.dma_semaphore, #tpu.memory_space<semaphore_mem>> -> memref<1x!tpu.dma_semaphore, #tpu.memory_space<semaphore_mem>>
    %21 = tpu.memref_squeeze %20 : memref<1x!tpu.dma_semaphore, #tpu.memory_space<semaphore_mem>> -> memref<!tpu.dma_semaphore, #tpu.memory_space<semaphore_mem>>
    tpu.enqueue_dma source(%18 : memref<1x64xf32, #tpu.memory_space<any>>) target(%19 : memref<1x64xf32, #tpu.memory_space<vmem>>) target_semaphore(%21 : memref<!tpu.dma_semaphore, #tpu.memory_space<semaphore_mem>>)
    %c3_i32 = arith.constant 3 : i32
    %22 = arith.addi %0, %c3_i32 : i32
    %23 = arith.index_cast %22 : i32 to index
    %24 = memref.load %arg1[%23] : memref<16xi32, #tpu.memory_space<smem>>
    %c0_i32_12 = arith.constant 0 : i32
    %c0_i32_13 = arith.constant 0 : i32
    %25 = tpu.memref_slice %arg2[%24, %c0_i32_13] : memref<192x64xf32, #tpu.memory_space<any>> -> memref<1x64xf32, #tpu.memory_space<any>>
    %c3_i32_14 = arith.constant 3 : i32
    %c0_i32_15 = arith.constant 0 : i32
    %26 = tpu.memref_slice %arg6[%c3_i32_14, %c0_i32_15] : memref<16x64xf32, #tpu.memory_space<vmem>> -> memref<1x64xf32, #tpu.memory_space<vmem>>
    %27 = tpu.memref_slice %arg7[%c0_i32_12] : memref<2x!tpu.dma_semaphore, #tpu.memory_space<semaphore_mem>> -> memref<1x!tpu.dma_semaphore, #tpu.memory_space<semaphore_mem>>
    %28 = tpu.memref_squeeze %27 : memref<1x!tpu.dma_semaphore, #tpu.memory_space<semaphore_mem>> -> memref<!tpu.dma_semaphore, #tpu.memory_space<semaphore_mem>>
    tpu.enqueue_dma source(%25 : memref<1x64xf32, #tpu.memory_space<any>>) target(%26 : memref<1x64xf32, #tpu.memory_space<vmem>>) target_semaphore(%28 : memref<!tpu.dma_semaphore, #tpu.memory_space<semaphore_mem>>)
    %c4_i32 = arith.constant 4 : i32
    %29 = arith.addi %0, %c4_i32 : i32
    %30 = arith.index_cast %29 : i32 to index
    %31 = memref.load %arg1[%30] : memref<16xi32, #tpu.memory_space<smem>>
    %c0_i32_16 = arith.constant 0 : i32
    %c0_i32_17 = arith.constant 0 : i32
    %32 = tpu.memref_slice %arg2[%31, %c0_i32_17] : memref<192x64xf32, #tpu.memory_space<any>> -> memref<1x64xf32, #tpu.memory_space<any>>
    %c4_i32_18 = arith.constant 4 : i32
    %c0_i32_19 = arith.constant 0 : i32
    %33 = tpu.memref_slice %arg6[%c4_i32_18, %c0_i32_19] : memref<16x64xf32, #tpu.memory_space<vmem>> -> memref<1x64xf32, #tpu.memory_space<vmem>>
    %34 = tpu.memref_slice %arg7[%c0_i32_16] : memref<2x!tpu.dma_semaphore, #tpu.memory_space<semaphore_mem>> -> memref<1x!tpu.dma_semaphore, #tpu.memory_space<semaphore_mem>>
    %35 = tpu.memref_squeeze %34 : memref<1x!tpu.dma_semaphore, #tpu.memory_space<semaphore_mem>> -> memref<!tpu.dma_semaphore, #tpu.memory_space<semaphore_mem>>
    tpu.enqueue_dma source(%32 : memref<1x64xf32, #tpu.memory_space<any>>) target(%33 : memref<1x64xf32, #tpu.memory_space<vmem>>) target_semaphore(%35 : memref<!tpu.dma_semaphore, #tpu.memory_space<semaphore_mem>>)
    %c5_i32 = arith.constant 5 : i32
    %36 = arith.addi %0, %c5_i32 : i32
    %37 = arith.index_cast %36 : i32 to index
    %38 = memref.load %arg1[%37] : memref<16xi32, #tpu.memory_space<smem>>
    %c0_i32_20 = arith.constant 0 : i32
    %c0_i32_21 = arith.constant 0 : i32
    %39 = tpu.memref_slice %arg2[%38, %c0_i32_21] : memref<192x64xf32, #tpu.memory_space<any>> -> memref<1x64xf32, #tpu.memory_space<any>>
    %c5_i32_22 = arith.constant 5 : i32
    %c0_i32_23 = arith.constant 0 : i32
    %40 = tpu.memref_slice %arg6[%c5_i32_22, %c0_i32_23] : memref<16x64xf32, #tpu.memory_space<vmem>> -> memref<1x64xf32, #tpu.memory_space<vmem>>
    %41 = tpu.memref_slice %arg7[%c0_i32_20] : memref<2x!tpu.dma_semaphore, #tpu.memory_space<semaphore_mem>> -> memref<1x!tpu.dma_semaphore, #tpu.memory_space<semaphore_mem>>
    %42 = tpu.memref_squeeze %41 : memref<1x!tpu.dma_semaphore, #tpu.memory_space<semaphore_mem>> -> memref<!tpu.dma_semaphore, #tpu.memory_space<semaphore_mem>>
    tpu.enqueue_dma source(%39 : memref<1x64xf32, #tpu.memory_space<any>>) target(%40 : memref<1x64xf32, #tpu.memory_space<vmem>>) target_semaphore(%42 : memref<!tpu.dma_semaphore, #tpu.memory_space<semaphore_mem>>)
    %c6_i32 = arith.constant 6 : i32
    %43 = arith.addi %0, %c6_i32 : i32
    %44 = arith.index_cast %43 : i32 to index
    %45 = memref.load %arg1[%44] : memref<16xi32, #tpu.memory_space<smem>>
    %c0_i32_24 = arith.constant 0 : i32
    %c0_i32_25 = arith.constant 0 : i32
    %46 = tpu.memref_slice %arg2[%45, %c0_i32_25] : memref<192x64xf32, #tpu.memory_space<any>> -> memref<1x64xf32, #tpu.memory_space<any>>
    %c6_i32_26 = arith.constant 6 : i32
    %c0_i32_27 = arith.constant 0 : i32
    %47 = tpu.memref_slice %arg6[%c6_i32_26, %c0_i32_27] : memref<16x64xf32, #tpu.memory_space<vmem>> -> memref<1x64xf32, #tpu.memory_space<vmem>>
    %48 = tpu.memref_slice %arg7[%c0_i32_24] : memref<2x!tpu.dma_semaphore, #tpu.memory_space<semaphore_mem>> -> memref<1x!tpu.dma_semaphore, #tpu.memory_space<semaphore_mem>>
    %49 = tpu.memref_squeeze %48 : memref<1x!tpu.dma_semaphore, #tpu.memory_space<semaphore_mem>> -> memref<!tpu.dma_semaphore, #tpu.memory_space<semaphore_mem>>
    tpu.enqueue_dma source(%46 : memref<1x64xf32, #tpu.memory_space<any>>) target(%47 : memref<1x64xf32, #tpu.memory_space<vmem>>) target_semaphore(%49 : memref<!tpu.dma_semaphore, #tpu.memory_space<semaphore_mem>>)
    %c7_i32 = arith.constant 7 : i32
    %50 = arith.addi %0, %c7_i32 : i32
    %51 = arith.index_cast %50 : i32 to index
    %52 = memref.load %arg1[%51] : memref<16xi32, #tpu.memory_space<smem>>
    %c0_i32_28 = arith.constant 0 : i32
    %c0_i32_29 = arith.constant 0 : i32
    %53 = tpu.memref_slice %arg2[%52, %c0_i32_29] : memref<192x64xf32, #tpu.memory_space<any>> -> memref<1x64xf32, #tpu.memory_space<any>>
    %c7_i32_30 = arith.constant 7 : i32
    %c0_i32_31 = arith.constant 0 : i32
    %54 = tpu.memref_slice %arg6[%c7_i32_30, %c0_i32_31] : memref<16x64xf32, #tpu.memory_space<vmem>> -> memref<1x64xf32, #tpu.memory_space<vmem>>
    %55 = tpu.memref_slice %arg7[%c0_i32_28] : memref<2x!tpu.dma_semaphore, #tpu.memory_space<semaphore_mem>> -> memref<1x!tpu.dma_semaphore, #tpu.memory_space<semaphore_mem>>
    %56 = tpu.memref_squeeze %55 : memref<1x!tpu.dma_semaphore, #tpu.memory_space<semaphore_mem>> -> memref<!tpu.dma_semaphore, #tpu.memory_space<semaphore_mem>>
    tpu.enqueue_dma source(%53 : memref<1x64xf32, #tpu.memory_space<any>>) target(%54 : memref<1x64xf32, #tpu.memory_space<vmem>>) target_semaphore(%56 : memref<!tpu.dma_semaphore, #tpu.memory_space<semaphore_mem>>)
    %c8_i32 = arith.constant 8 : i32
    %57 = arith.addi %0, %c8_i32 : i32
    %58 = arith.index_cast %57 : i32 to index
    %59 = memref.load %arg1[%58] : memref<16xi32, #tpu.memory_space<smem>>
    %c1_i32_32 = arith.constant 1 : i32
    %c0_i32_33 = arith.constant 0 : i32
    %60 = tpu.memref_slice %arg2[%59, %c0_i32_33] : memref<192x64xf32, #tpu.memory_space<any>> -> memref<1x64xf32, #tpu.memory_space<any>>
    %c8_i32_34 = arith.constant 8 : i32
    %c0_i32_35 = arith.constant 0 : i32
    %61 = tpu.memref_slice %arg6[%c8_i32_34, %c0_i32_35] : memref<16x64xf32, #tpu.memory_space<vmem>> -> memref<1x64xf32, #tpu.memory_space<vmem>>
    %62 = tpu.memref_slice %arg7[%c1_i32_32] : memref<2x!tpu.dma_semaphore, #tpu.memory_space<semaphore_mem>> -> memref<1x!tpu.dma_semaphore, #tpu.memory_space<semaphore_mem>>
    %63 = tpu.memref_squeeze %62 : memref<1x!tpu.dma_semaphore, #tpu.memory_space<semaphore_mem>> -> memref<!tpu.dma_semaphore, #tpu.memory_space<semaphore_mem>>
    tpu.enqueue_dma source(%60 : memref<1x64xf32, #tpu.memory_space<any>>) target(%61 : memref<1x64xf32, #tpu.memory_space<vmem>>) target_semaphore(%63 : memref<!tpu.dma_semaphore, #tpu.memory_space<semaphore_mem>>)
    %c9_i32 = arith.constant 9 : i32
    %64 = arith.addi %0, %c9_i32 : i32
    %65 = arith.index_cast %64 : i32 to index
    %66 = memref.load %arg1[%65] : memref<16xi32, #tpu.memory_space<smem>>
    %c1_i32_36 = arith.constant 1 : i32
    %c0_i32_37 = arith.constant 0 : i32
    %67 = tpu.memref_slice %arg2[%66, %c0_i32_37] : memref<192x64xf32, #tpu.memory_space<any>> -> memref<1x64xf32, #tpu.memory_space<any>>
    %c9_i32_38 = arith.constant 9 : i32
    %c0_i32_39 = arith.constant 0 : i32
    %68 = tpu.memref_slice %arg6[%c9_i32_38, %c0_i32_39] : memref<16x64xf32, #tpu.memory_space<vmem>> -> memref<1x64xf32, #tpu.memory_space<vmem>>
    %69 = tpu.memref_slice %arg7[%c1_i32_36] : memref<2x!tpu.dma_semaphore, #tpu.memory_space<semaphore_mem>> -> memref<1x!tpu.dma_semaphore, #tpu.memory_space<semaphore_mem>>
    %70 = tpu.memref_squeeze %69 : memref<1x!tpu.dma_semaphore, #tpu.memory_space<semaphore_mem>> -> memref<!tpu.dma_semaphore, #tpu.memory_space<semaphore_mem>>
    tpu.enqueue_dma source(%67 : memref<1x64xf32, #tpu.memory_space<any>>) target(%68 : memref<1x64xf32, #tpu.memory_space<vmem>>) target_semaphore(%70 : memref<!tpu.dma_semaphore, #tpu.memory_space<semaphore_mem>>)
    %c10_i32 = arith.constant 10 : i32
    %71 = arith.addi %0, %c10_i32 : i32
    %72 = arith.index_cast %71 : i32 to index
    %73 = memref.load %arg1[%72] : memref<16xi32, #tpu.memory_space<smem>>
    %c1_i32_40 = arith.constant 1 : i32
    %c0_i32_41 = arith.constant 0 : i32
    %74 = tpu.memref_slice %arg2[%73, %c0_i32_41] : memref<192x64xf32, #tpu.memory_space<any>> -> memref<1x64xf32, #tpu.memory_space<any>>
    %c10_i32_42 = arith.constant 10 : i32
    %c0_i32_43 = arith.constant 0 : i32
    %75 = tpu.memref_slice %arg6[%c10_i32_42, %c0_i32_43] : memref<16x64xf32, #tpu.memory_space<vmem>> -> memref<1x64xf32, #tpu.memory_space<vmem>>
    %76 = tpu.memref_slice %arg7[%c1_i32_40] : memref<2x!tpu.dma_semaphore, #tpu.memory_space<semaphore_mem>> -> memref<1x!tpu.dma_semaphore, #tpu.memory_space<semaphore_mem>>
    %77 = tpu.memref_squeeze %76 : memref<1x!tpu.dma_semaphore, #tpu.memory_space<semaphore_mem>> -> memref<!tpu.dma_semaphore, #tpu.memory_space<semaphore_mem>>
    tpu.enqueue_dma source(%74 : memref<1x64xf32, #tpu.memory_space<any>>) target(%75 : memref<1x64xf32, #tpu.memory_space<vmem>>) target_semaphore(%77 : memref<!tpu.dma_semaphore, #tpu.memory_space<semaphore_mem>>)
    %c11_i32 = arith.constant 11 : i32
    %78 = arith.addi %0, %c11_i32 : i32
    %79 = arith.index_cast %78 : i32 to index
    %80 = memref.load %arg1[%79] : memref<16xi32, #tpu.memory_space<smem>>
    %c1_i32_44 = arith.constant 1 : i32
    %c0_i32_45 = arith.constant 0 : i32
    %81 = tpu.memref_slice %arg2[%80, %c0_i32_45] : memref<192x64xf32, #tpu.memory_space<any>> -> memref<1x64xf32, #tpu.memory_space<any>>
    %c11_i32_46 = arith.constant 11 : i32
    %c0_i32_47 = arith.constant 0 : i32
    %82 = tpu.memref_slice %arg6[%c11_i32_46, %c0_i32_47] : memref<16x64xf32, #tpu.memory_space<vmem>> -> memref<1x64xf32, #tpu.memory_space<vmem>>
    %83 = tpu.memref_slice %arg7[%c1_i32_44] : memref<2x!tpu.dma_semaphore, #tpu.memory_space<semaphore_mem>> -> memref<1x!tpu.dma_semaphore, #tpu.memory_space<semaphore_mem>>
    %84 = tpu.memref_squeeze %83 : memref<1x!tpu.dma_semaphore, #tpu.memory_space<semaphore_mem>> -> memref<!tpu.dma_semaphore, #tpu.memory_space<semaphore_mem>>
    tpu.enqueue_dma source(%81 : memref<1x64xf32, #tpu.memory_space<any>>) target(%82 : memref<1x64xf32, #tpu.memory_space<vmem>>) target_semaphore(%84 : memref<!tpu.dma_semaphore, #tpu.memory_space<semaphore_mem>>)
    %c12_i32 = arith.constant 12 : i32
    %85 = arith.addi %0, %c12_i32 : i32
    %86 = arith.index_cast %85 : i32 to index
    %87 = memref.load %arg1[%86] : memref<16xi32, #tpu.memory_space<smem>>
    %c1_i32_48 = arith.constant 1 : i32
    %c0_i32_49 = arith.constant 0 : i32
    %88 = tpu.memref_slice %arg2[%87, %c0_i32_49] : memref<192x64xf32, #tpu.memory_space<any>> -> memref<1x64xf32, #tpu.memory_space<any>>
    %c12_i32_50 = arith.constant 12 : i32
    %c0_i32_51 = arith.constant 0 : i32
    %89 = tpu.memref_slice %arg6[%c12_i32_50, %c0_i32_51] : memref<16x64xf32, #tpu.memory_space<vmem>> -> memref<1x64xf32, #tpu.memory_space<vmem>>
    %90 = tpu.memref_slice %arg7[%c1_i32_48] : memref<2x!tpu.dma_semaphore, #tpu.memory_space<semaphore_mem>> -> memref<1x!tpu.dma_semaphore, #tpu.memory_space<semaphore_mem>>
    %91 = tpu.memref_squeeze %90 : memref<1x!tpu.dma_semaphore, #tpu.memory_space<semaphore_mem>> -> memref<!tpu.dma_semaphore, #tpu.memory_space<semaphore_mem>>
    tpu.enqueue_dma source(%88 : memref<1x64xf32, #tpu.memory_space<any>>) target(%89 : memref<1x64xf32, #tpu.memory_space<vmem>>) target_semaphore(%91 : memref<!tpu.dma_semaphore, #tpu.memory_space<semaphore_mem>>)
    %c13_i32 = arith.constant 13 : i32
    %92 = arith.addi %0, %c13_i32 : i32
    %93 = arith.index_cast %92 : i32 to index
    %94 = memref.load %arg1[%93] : memref<16xi32, #tpu.memory_space<smem>>
    %c1_i32_52 = arith.constant 1 : i32
    %c0_i32_53 = arith.constant 0 : i32
    %95 = tpu.memref_slice %arg2[%94, %c0_i32_53] : memref<192x64xf32, #tpu.memory_space<any>> -> memref<1x64xf32, #tpu.memory_space<any>>
    %c13_i32_54 = arith.constant 13 : i32
    %c0_i32_55 = arith.constant 0 : i32
    %96 = tpu.memref_slice %arg6[%c13_i32_54, %c0_i32_55] : memref<16x64xf32, #tpu.memory_space<vmem>> -> memref<1x64xf32, #tpu.memory_space<vmem>>
    %97 = tpu.memref_slice %arg7[%c1_i32_52] : memref<2x!tpu.dma_semaphore, #tpu.memory_space<semaphore_mem>> -> memref<1x!tpu.dma_semaphore, #tpu.memory_space<semaphore_mem>>
    %98 = tpu.memref_squeeze %97 : memref<1x!tpu.dma_semaphore, #tpu.memory_space<semaphore_mem>> -> memref<!tpu.dma_semaphore, #tpu.memory_space<semaphore_mem>>
    tpu.enqueue_dma source(%95 : memref<1x64xf32, #tpu.memory_space<any>>) target(%96 : memref<1x64xf32, #tpu.memory_space<vmem>>) target_semaphore(%98 : memref<!tpu.dma_semaphore, #tpu.memory_space<semaphore_mem>>)
    %c14_i32 = arith.constant 14 : i32
    %99 = arith.addi %0, %c14_i32 : i32
    %100 = arith.index_cast %99 : i32 to index
    %101 = memref.load %arg1[%100] : memref<16xi32, #tpu.memory_space<smem>>
    %c1_i32_56 = arith.constant 1 : i32
    %c0_i32_57 = arith.constant 0 : i32
    %102 = tpu.memref_slice %arg2[%101, %c0_i32_57] : memref<192x64xf32, #tpu.memory_space<any>> -> memref<1x64xf32, #tpu.memory_space<any>>
    %c14_i32_58 = arith.constant 14 : i32
    %c0_i32_59 = arith.constant 0 : i32
    %103 = tpu.memref_slice %arg6[%c14_i32_58, %c0_i32_59] : memref<16x64xf32, #tpu.memory_space<vmem>> -> memref<1x64xf32, #tpu.memory_space<vmem>>
    %104 = tpu.memref_slice %arg7[%c1_i32_56] : memref<2x!tpu.dma_semaphore, #tpu.memory_space<semaphore_mem>> -> memref<1x!tpu.dma_semaphore, #tpu.memory_space<semaphore_mem>>
    %105 = tpu.memref_squeeze %104 : memref<1x!tpu.dma_semaphore, #tpu.memory_space<semaphore_mem>> -> memref<!tpu.dma_semaphore, #tpu.memory_space<semaphore_mem>>
    tpu.enqueue_dma source(%102 : memref<1x64xf32, #tpu.memory_space<any>>) target(%103 : memref<1x64xf32, #tpu.memory_space<vmem>>) target_semaphore(%105 : memref<!tpu.dma_semaphore, #tpu.memory_space<semaphore_mem>>)
    %c15_i32 = arith.constant 15 : i32
    %106 = arith.addi %0, %c15_i32 : i32
    %107 = arith.index_cast %106 : i32 to index
    %108 = memref.load %arg1[%107] : memref<16xi32, #tpu.memory_space<smem>>
    %c1_i32_60 = arith.constant 1 : i32
    %c0_i32_61 = arith.constant 0 : i32
    %109 = tpu.memref_slice %arg2[%108, %c0_i32_61] : memref<192x64xf32, #tpu.memory_space<any>> -> memref<1x64xf32, #tpu.memory_space<any>>
    %c15_i32_62 = arith.constant 15 : i32
    %c0_i32_63 = arith.constant 0 : i32
    %110 = tpu.memref_slice %arg6[%c15_i32_62, %c0_i32_63] : memref<16x64xf32, #tpu.memory_space<vmem>> -> memref<1x64xf32, #tpu.memory_space<vmem>>
    %111 = tpu.memref_slice %arg7[%c1_i32_60] : memref<2x!tpu.dma_semaphore, #tpu.memory_space<semaphore_mem>> -> memref<1x!tpu.dma_semaphore, #tpu.memory_space<semaphore_mem>>
    %112 = tpu.memref_squeeze %111 : memref<1x!tpu.dma_semaphore, #tpu.memory_space<semaphore_mem>> -> memref<!tpu.dma_semaphore, #tpu.memory_space<semaphore_mem>>
    tpu.enqueue_dma source(%109 : memref<1x64xf32, #tpu.memory_space<any>>) target(%110 : memref<1x64xf32, #tpu.memory_space<vmem>>) target_semaphore(%112 : memref<!tpu.dma_semaphore, #tpu.memory_space<semaphore_mem>>)
    %c0 = arith.constant 0 : index
    %c0_64 = arith.constant 0 : index
    %113 = vector.load %arg4[%c0, %c0_64] : memref<1x1xf32, #tpu.memory_space<vmem>>, vector<1x1xf32>
    %c0_i32_65 = arith.constant 0 : i32
    %c0_i32_66 = arith.constant 0 : i32
    %114 = tpu.memref_slice %arg2[%3, %c0_i32_66] : memref<192x64xf32, #tpu.memory_space<any>> -> memref<1x64xf32, #tpu.memory_space<any>>
    %c0_i32_67 = arith.constant 0 : i32
    %c0_i32_68 = arith.constant 0 : i32
    %115 = tpu.memref_slice %arg6[%c0_i32_67, %c0_i32_68] : memref<16x64xf32, #tpu.memory_space<vmem>> -> memref<1x64xf32, #tpu.memory_space<vmem>>
    %116 = tpu.memref_slice %arg7[%c0_i32_65] : memref<2x!tpu.dma_semaphore, #tpu.memory_space<semaphore_mem>> -> memref<1x!tpu.dma_semaphore, #tpu.memory_space<semaphore_mem>>
    %117 = tpu.memref_squeeze %116 : memref<1x!tpu.dma_semaphore, #tpu.memory_space<semaphore_mem>> -> memref<!tpu.dma_semaphore, #tpu.memory_space<semaphore_mem>>
    tpu.wait_dma2 semaphore(%117 : memref<!tpu.dma_semaphore, #tpu.memory_space<semaphore_mem>>) src(%114 : memref<1x64xf32, #tpu.memory_space<any>>) dst(%115 : memref<1x64xf32, #tpu.memory_space<vmem>>)
    %c0_i32_69 = arith.constant 0 : i32
    %c0_i32_70 = arith.constant 0 : i32
    %118 = tpu.memref_slice %arg2[%10, %c0_i32_70] : memref<192x64xf32, #tpu.memory_space<any>> -> memref<1x64xf32, #tpu.memory_space<any>>
    %c1_i32_71 = arith.constant 1 : i32
    %c0_i32_72 = arith.constant 0 : i32
    %119 = tpu.memref_slice %arg6[%c1_i32_71, %c0_i32_72] : memref<16x64xf32, #tpu.memory_space<vmem>> -> memref<1x64xf32, #tpu.memory_space<vmem>>
    %120 = tpu.memref_slice %arg7[%c0_i32_69] : memref<2x!tpu.dma_semaphore, #tpu.memory_space<semaphore_mem>> -> memref<1x!tpu.dma_semaphore, #tpu.memory_space<semaphore_mem>>
    %121 = tpu.memref_squeeze %120 : memref<1x!tpu.dma_semaphore, #tpu.memory_space<semaphore_mem>> -> memref<!tpu.dma_semaphore, #tpu.memory_space<semaphore_mem>>
    tpu.wait_dma2 semaphore(%121 : memref<!tpu.dma_semaphore, #tpu.memory_space<semaphore_mem>>) src(%118 : memref<1x64xf32, #tpu.memory_space<any>>) dst(%119 : memref<1x64xf32, #tpu.memory_space<vmem>>)
    %c0_i32_73 = arith.constant 0 : i32
    %c0_i32_74 = arith.constant 0 : i32
    %122 = tpu.memref_slice %arg2[%17, %c0_i32_74] : memref<192x64xf32, #tpu.memory_space<any>> -> memref<1x64xf32, #tpu.memory_space<any>>
    %c2_i32_75 = arith.constant 2 : i32
    %c0_i32_76 = arith.constant 0 : i32
    %123 = tpu.memref_slice %arg6[%c2_i32_75, %c0_i32_76] : memref<16x64xf32, #tpu.memory_space<vmem>> -> memref<1x64xf32, #tpu.memory_space<vmem>>
    %124 = tpu.memref_slice %arg7[%c0_i32_73] : memref<2x!tpu.dma_semaphore, #tpu.memory_space<semaphore_mem>> -> memref<1x!tpu.dma_semaphore, #tpu.memory_space<semaphore_mem>>
    %125 = tpu.memref_squeeze %124 : memref<1x!tpu.dma_semaphore, #tpu.memory_space<semaphore_mem>> -> memref<!tpu.dma_semaphore, #tpu.memory_space<semaphore_mem>>
    tpu.wait_dma2 semaphore(%125 : memref<!tpu.dma_semaphore, #tpu.memory_space<semaphore_mem>>) src(%122 : memref<1x64xf32, #tpu.memory_space<any>>) dst(%123 : memref<1x64xf32, #tpu.memory_space<vmem>>)
    %c0_i32_77 = arith.constant 0 : i32
    %c0_i32_78 = arith.constant 0 : i32
    %126 = tpu.memref_slice %arg2[%24, %c0_i32_78] : memref<192x64xf32, #tpu.memory_space<any>> -> memref<1x64xf32, #tpu.memory_space<any>>
    %c3_i32_79 = arith.constant 3 : i32
    %c0_i32_80 = arith.constant 0 : i32
    %127 = tpu.memref_slice %arg6[%c3_i32_79, %c0_i32_80] : memref<16x64xf32, #tpu.memory_space<vmem>> -> memref<1x64xf32, #tpu.memory_space<vmem>>
    %128 = tpu.memref_slice %arg7[%c0_i32_77] : memref<2x!tpu.dma_semaphore, #tpu.memory_space<semaphore_mem>> -> memref<1x!tpu.dma_semaphore, #tpu.memory_space<semaphore_mem>>
    %129 = tpu.memref_squeeze %128 : memref<1x!tpu.dma_semaphore, #tpu.memory_space<semaphore_mem>> -> memref<!tpu.dma_semaphore, #tpu.memory_space<semaphore_mem>>
    tpu.wait_dma2 semaphore(%129 : memref<!tpu.dma_semaphore, #tpu.memory_space<semaphore_mem>>) src(%126 : memref<1x64xf32, #tpu.memory_space<any>>) dst(%127 : memref<1x64xf32, #tpu.memory_space<vmem>>)
    %c0_i32_81 = arith.constant 0 : i32
    %c0_i32_82 = arith.constant 0 : i32
    %130 = tpu.memref_slice %arg2[%31, %c0_i32_82] : memref<192x64xf32, #tpu.memory_space<any>> -> memref<1x64xf32, #tpu.memory_space<any>>
    %c4_i32_83 = arith.constant 4 : i32
    %c0_i32_84 = arith.constant 0 : i32
    %131 = tpu.memref_slice %arg6[%c4_i32_83, %c0_i32_84] : memref<16x64xf32, #tpu.memory_space<vmem>> -> memref<1x64xf32, #tpu.memory_space<vmem>>
    %132 = tpu.memref_slice %arg7[%c0_i32_81] : memref<2x!tpu.dma_semaphore, #tpu.memory_space<semaphore_mem>> -> memref<1x!tpu.dma_semaphore, #tpu.memory_space<semaphore_mem>>
    %133 = tpu.memref_squeeze %132 : memref<1x!tpu.dma_semaphore, #tpu.memory_space<semaphore_mem>> -> memref<!tpu.dma_semaphore, #tpu.memory_space<semaphore_mem>>
    tpu.wait_dma2 semaphore(%133 : memref<!tpu.dma_semaphore, #tpu.memory_space<semaphore_mem>>) src(%130 : memref<1x64xf32, #tpu.memory_space<any>>) dst(%131 : memref<1x64xf32, #tpu.memory_space<vmem>>)
    %c0_i32_85 = arith.constant 0 : i32
    %c0_i32_86 = arith.constant 0 : i32
    %134 = tpu.memref_slice %arg2[%38, %c0_i32_86] : memref<192x64xf32, #tpu.memory_space<any>> -> memref<1x64xf32, #tpu.memory_space<any>>
    %c5_i32_87 = arith.constant 5 : i32
    %c0_i32_88 = arith.constant 0 : i32
    %135 = tpu.memref_slice %arg6[%c5_i32_87, %c0_i32_88] : memref<16x64xf32, #tpu.memory_space<vmem>> -> memref<1x64xf32, #tpu.memory_space<vmem>>
    %136 = tpu.memref_slice %arg7[%c0_i32_85] : memref<2x!tpu.dma_semaphore, #tpu.memory_space<semaphore_mem>> -> memref<1x!tpu.dma_semaphore, #tpu.memory_space<semaphore_mem>>
    %137 = tpu.memref_squeeze %136 : memref<1x!tpu.dma_semaphore, #tpu.memory_space<semaphore_mem>> -> memref<!tpu.dma_semaphore, #tpu.memory_space<semaphore_mem>>
    tpu.wait_dma2 semaphore(%137 : memref<!tpu.dma_semaphore, #tpu.memory_space<semaphore_mem>>) src(%134 : memref<1x64xf32, #tpu.memory_space<any>>) dst(%135 : memref<1x64xf32, #tpu.memory_space<vmem>>)
    %c0_i32_89 = arith.constant 0 : i32
    %c0_i32_90 = arith.constant 0 : i32
    %138 = tpu.memref_slice %arg2[%45, %c0_i32_90] : memref<192x64xf32, #tpu.memory_space<any>> -> memref<1x64xf32, #tpu.memory_space<any>>
    %c6_i32_91 = arith.constant 6 : i32
    %c0_i32_92 = arith.constant 0 : i32
    %139 = tpu.memref_slice %arg6[%c6_i32_91, %c0_i32_92] : memref<16x64xf32, #tpu.memory_space<vmem>> -> memref<1x64xf32, #tpu.memory_space<vmem>>
    %140 = tpu.memref_slice %arg7[%c0_i32_89] : memref<2x!tpu.dma_semaphore, #tpu.memory_space<semaphore_mem>> -> memref<1x!tpu.dma_semaphore, #tpu.memory_space<semaphore_mem>>
    %141 = tpu.memref_squeeze %140 : memref<1x!tpu.dma_semaphore, #tpu.memory_space<semaphore_mem>> -> memref<!tpu.dma_semaphore, #tpu.memory_space<semaphore_mem>>
    tpu.wait_dma2 semaphore(%141 : memref<!tpu.dma_semaphore, #tpu.memory_space<semaphore_mem>>) src(%138 : memref<1x64xf32, #tpu.memory_space<any>>) dst(%139 : memref<1x64xf32, #tpu.memory_space<vmem>>)
    %c0_i32_93 = arith.constant 0 : i32
    %c0_i32_94 = arith.constant 0 : i32
    %142 = tpu.memref_slice %arg2[%52, %c0_i32_94] : memref<192x64xf32, #tpu.memory_space<any>> -> memref<1x64xf32, #tpu.memory_space<any>>
    %c7_i32_95 = arith.constant 7 : i32
    %c0_i32_96 = arith.constant 0 : i32
    %143 = tpu.memref_slice %arg6[%c7_i32_95, %c0_i32_96] : memref<16x64xf32, #tpu.memory_space<vmem>> -> memref<1x64xf32, #tpu.memory_space<vmem>>
    %144 = tpu.memref_slice %arg7[%c0_i32_93] : memref<2x!tpu.dma_semaphore, #tpu.memory_space<semaphore_mem>> -> memref<1x!tpu.dma_semaphore, #tpu.memory_space<semaphore_mem>>
    %145 = tpu.memref_squeeze %144 : memref<1x!tpu.dma_semaphore, #tpu.memory_space<semaphore_mem>> -> memref<!tpu.dma_semaphore, #tpu.memory_space<semaphore_mem>>
    tpu.wait_dma2 semaphore(%145 : memref<!tpu.dma_semaphore, #tpu.memory_space<semaphore_mem>>) src(%142 : memref<1x64xf32, #tpu.memory_space<any>>) dst(%143 : memref<1x64xf32, #tpu.memory_space<vmem>>)
    %cst = arith.constant 0.000000e+00 : f32
    %146 = vector.broadcast %cst : f32 to vector<8x1xf32>
    %c0_97 = arith.constant 0 : index
    %c0_98 = arith.constant 0 : index
    %147 = vector.load %arg6[%c0_97, %c0_98] : memref<16x64xf32, #tpu.memory_space<vmem>>, vector<8x64xf32>
    %c0_99 = arith.constant 0 : index
    %c0_100 = arith.constant 0 : index
    %148 = vector.load %arg3[%c0_99, %c0_100] : memref<1x64xf32, #tpu.memory_space<vmem>>, vector<1x64xf32>
    %149 = vector.broadcast %148 : vector<1x64xf32> to vector<8x64xf32>
    %150 = arith.mulf %147, %149 : vector<8x64xf32>
    %cst_101 = arith.constant dense<0.000000e+00> : vector<8xf32>
    %151 = vector.multi_reduction <add>, %150, %cst_101 [1] : vector<8x64xf32> to vector<8xf32>
    %152 = vector.shape_cast %151 : vector<8xf32> to vector<8x1xf32>
    %153 = arith.addf %146, %152 : vector<8x1xf32>
    %154 = vector.broadcast %113 : vector<1x1xf32> to vector<8x1xf32>
    %155 = arith.addf %153, %154 : vector<8x1xf32>
    %c0_102 = arith.constant 0 : index
    %c0_103 = arith.constant 0 : index
    %156 = vector.load %arg5[%c0_102, %c0_103] : memref<16x1xf32, #tpu.memory_space<vmem>>, vector<8x1xf32>
    tpu.vector_store %arg5[%c0_102, %c0_103], %155 {strides = array<i32>} : memref<16x1xf32, #tpu.memory_space<vmem>>, vector<8x1xf32>,
    %c1_i32_104 = arith.constant 1 : i32
    %c0_i32_105 = arith.constant 0 : i32
    %157 = tpu.memref_slice %arg2[%59, %c0_i32_105] : memref<192x64xf32, #tpu.memory_space<any>> -> memref<1x64xf32, #tpu.memory_space<any>>
    %c8_i32_106 = arith.constant 8 : i32
    %c0_i32_107 = arith.constant 0 : i32
    %158 = tpu.memref_slice %arg6[%c8_i32_106, %c0_i32_107] : memref<16x64xf32, #tpu.memory_space<vmem>> -> memref<1x64xf32, #tpu.memory_space<vmem>>
    %159 = tpu.memref_slice %arg7[%c1_i32_104] : memref<2x!tpu.dma_semaphore, #tpu.memory_space<semaphore_mem>> -> memref<1x!tpu.dma_semaphore, #tpu.memory_space<semaphore_mem>>
    %160 = tpu.memref_squeeze %159 : memref<1x!tpu.dma_semaphore, #tpu.memory_space<semaphore_mem>> -> memref<!tpu.dma_semaphore, #tpu.memory_space<semaphore_mem>>
    tpu.wait_dma2 semaphore(%160 : memref<!tpu.dma_semaphore, #tpu.memory_space<semaphore_mem>>) src(%157 : memref<1x64xf32, #tpu.memory_space<any>>) dst(%158 : memref<1x64xf32, #tpu.memory_space<vmem>>)
    %c1_i32_108 = arith.constant 1 : i32
    %c0_i32_109 = arith.constant 0 : i32
    %161 = tpu.memref_slice %arg2[%66, %c0_i32_109] : memref<192x64xf32, #tpu.memory_space<any>> -> memref<1x64xf32, #tpu.memory_space<any>>
    %c9_i32_110 = arith.constant 9 : i32
    %c0_i32_111 = arith.constant 0 : i32
    %162 = tpu.memref_slice %arg6[%c9_i32_110, %c0_i32_111] : memref<16x64xf32, #tpu.memory_space<vmem>> -> memref<1x64xf32, #tpu.memory_space<vmem>>
    %163 = tpu.memref_slice %arg7[%c1_i32_108] : memref<2x!tpu.dma_semaphore, #tpu.memory_space<semaphore_mem>> -> memref<1x!tpu.dma_semaphore, #tpu.memory_space<semaphore_mem>>
    %164 = tpu.memref_squeeze %163 : memref<1x!tpu.dma_semaphore, #tpu.memory_space<semaphore_mem>> -> memref<!tpu.dma_semaphore, #tpu.memory_space<semaphore_mem>>
    tpu.wait_dma2 semaphore(%164 : memref<!tpu.dma_semaphore, #tpu.memory_space<semaphore_mem>>) src(%161 : memref<1x64xf32, #tpu.memory_space<any>>) dst(%162 : memref<1x64xf32, #tpu.memory_space<vmem>>)
    %c1_i32_112 = arith.constant 1 : i32
    %c0_i32_113 = arith.constant 0 : i32
    %165 = tpu.memref_slice %arg2[%73, %c0_i32_113] : memref<192x64xf32, #tpu.memory_space<any>> -> memref<1x64xf32, #tpu.memory_space<any>>
    %c10_i32_114 = arith.constant 10 : i32
    %c0_i32_115 = arith.constant 0 : i32
    %166 = tpu.memref_slice %arg6[%c10_i32_114, %c0_i32_115] : memref<16x64xf32, #tpu.memory_space<vmem>> -> memref<1x64xf32, #tpu.memory_space<vmem>>
    %167 = tpu.memref_slice %arg7[%c1_i32_112] : memref<2x!tpu.dma_semaphore, #tpu.memory_space<semaphore_mem>> -> memref<1x!tpu.dma_semaphore, #tpu.memory_space<semaphore_mem>>
    %168 = tpu.memref_squeeze %167 : memref<1x!tpu.dma_semaphore, #tpu.memory_space<semaphore_mem>> -> memref<!tpu.dma_semaphore, #tpu.memory_space<semaphore_mem>>
    tpu.wait_dma2 semaphore(%168 : memref<!tpu.dma_semaphore, #tpu.memory_space<semaphore_mem>>) src(%165 : memref<1x64xf32, #tpu.memory_space<any>>) dst(%166 : memref<1x64xf32, #tpu.memory_space<vmem>>)
    %c1_i32_116 = arith.constant 1 : i32
    %c0_i32_117 = arith.constant 0 : i32
    %169 = tpu.memref_slice %arg2[%80, %c0_i32_117] : memref<192x64xf32, #tpu.memory_space<any>> -> memref<1x64xf32, #tpu.memory_space<any>>
    %c11_i32_118 = arith.constant 11 : i32
    %c0_i32_119 = arith.constant 0 : i32
    %170 = tpu.memref_slice %arg6[%c11_i32_118, %c0_i32_119] : memref<16x64xf32, #tpu.memory_space<vmem>> -> memref<1x64xf32, #tpu.memory_space<vmem>>
    %171 = tpu.memref_slice %arg7[%c1_i32_116] : memref<2x!tpu.dma_semaphore, #tpu.memory_space<semaphore_mem>> -> memref<1x!tpu.dma_semaphore, #tpu.memory_space<semaphore_mem>>
    %172 = tpu.memref_squeeze %171 : memref<1x!tpu.dma_semaphore, #tpu.memory_space<semaphore_mem>> -> memref<!tpu.dma_semaphore, #tpu.memory_space<semaphore_mem>>
    tpu.wait_dma2 semaphore(%172 : memref<!tpu.dma_semaphore, #tpu.memory_space<semaphore_mem>>) src(%169 : memref<1x64xf32, #tpu.memory_space<any>>) dst(%170 : memref<1x64xf32, #tpu.memory_space<vmem>>)
    %c1_i32_120 = arith.constant 1 : i32
    %c0_i32_121 = arith.constant 0 : i32
    %173 = tpu.memref_slice %arg2[%87, %c0_i32_121] : memref<192x64xf32, #tpu.memory_space<any>> -> memref<1x64xf32, #tpu.memory_space<any>>
    %c12_i32_122 = arith.constant 12 : i32
    %c0_i32_123 = arith.constant 0 : i32
    %174 = tpu.memref_slice %arg6[%c12_i32_122, %c0_i32_123] : memref<16x64xf32, #tpu.memory_space<vmem>> -> memref<1x64xf32, #tpu.memory_space<vmem>>
    %175 = tpu.memref_slice %arg7[%c1_i32_120] : memref<2x!tpu.dma_semaphore, #tpu.memory_space<semaphore_mem>> -> memref<1x!tpu.dma_semaphore, #tpu.memory_space<semaphore_mem>>
    %176 = tpu.memref_squeeze %175 : memref<1x!tpu.dma_semaphore, #tpu.memory_space<semaphore_mem>> -> memref<!tpu.dma_semaphore, #tpu.memory_space<semaphore_mem>>
    tpu.wait_dma2 semaphore(%176 : memref<!tpu.dma_semaphore, #tpu.memory_space<semaphore_mem>>) src(%173 : memref<1x64xf32, #tpu.memory_space<any>>) dst(%174 : memref<1x64xf32, #tpu.memory_space<vmem>>)
    %c1_i32_124 = arith.constant 1 : i32
    %c0_i32_125 = arith.constant 0 : i32
    %177 = tpu.memref_slice %arg2[%94, %c0_i32_125] : memref<192x64xf32, #tpu.memory_space<any>> -> memref<1x64xf32, #tpu.memory_space<any>>
    %c13_i32_126 = arith.constant 13 : i32
    %c0_i32_127 = arith.constant 0 : i32
    %178 = tpu.memref_slice %arg6[%c13_i32_126, %c0_i32_127] : memref<16x64xf32, #tpu.memory_space<vmem>> -> memref<1x64xf32, #tpu.memory_space<vmem>>
    %179 = tpu.memref_slice %arg7[%c1_i32_124] : memref<2x!tpu.dma_semaphore, #tpu.memory_space<semaphore_mem>> -> memref<1x!tpu.dma_semaphore, #tpu.memory_space<semaphore_mem>>
    %180 = tpu.memref_squeeze %179 : memref<1x!tpu.dma_semaphore, #tpu.memory_space<semaphore_mem>> -> memref<!tpu.dma_semaphore, #tpu.memory_space<semaphore_mem>>
    tpu.wait_dma2 semaphore(%180 : memref<!tpu.dma_semaphore, #tpu.memory_space<semaphore_mem>>) src(%177 : memref<1x64xf32, #tpu.memory_space<any>>) dst(%178 : memref<1x64xf32, #tpu.memory_space<vmem>>)
    %c1_i32_128 = arith.constant 1 : i32
    %c0_i32_129 = arith.constant 0 : i32
    %181 = tpu.memref_slice %arg2[%101, %c0_i32_129] : memref<192x64xf32, #tpu.memory_space<any>> -> memref<1x64xf32, #tpu.memory_space<any>>
    %c14_i32_130 = arith.constant 14 : i32
    %c0_i32_131 = arith.constant 0 : i32
    %182 = tpu.memref_slice %arg6[%c14_i32_130, %c0_i32_131] : memref<16x64xf32, #tpu.memory_space<vmem>> -> memref<1x64xf32, #tpu.memory_space<vmem>>
    %183 = tpu.memref_slice %arg7[%c1_i32_128] : memref<2x!tpu.dma_semaphore, #tpu.memory_space<semaphore_mem>> -> memref<1x!tpu.dma_semaphore, #tpu.memory_space<semaphore_mem>>
    %184 = tpu.memref_squeeze %183 : memref<1x!tpu.dma_semaphore, #tpu.memory_space<semaphore_mem>> -> memref<!tpu.dma_semaphore, #tpu.memory_space<semaphore_mem>>
    tpu.wait_dma2 semaphore(%184 : memref<!tpu.dma_semaphore, #tpu.memory_space<semaphore_mem>>) src(%181 : memref<1x64xf32, #tpu.memory_space<any>>) dst(%182 : memref<1x64xf32, #tpu.memory_space<vmem>>)
    %c1_i32_132 = arith.constant 1 : i32
    %c0_i32_133 = arith.constant 0 : i32
    %185 = tpu.memref_slice %arg2[%108, %c0_i32_133] : memref<192x64xf32, #tpu.memory_space<any>> -> memref<1x64xf32, #tpu.memory_space<any>>
    %c15_i32_134 = arith.constant 15 : i32
    %c0_i32_135 = arith.constant 0 : i32
    %186 = tpu.memref_slice %arg6[%c15_i32_134, %c0_i32_135] : memref<16x64xf32, #tpu.memory_space<vmem>> -> memref<1x64xf32, #tpu.memory_space<vmem>>
    %187 = tpu.memref_slice %arg7[%c1_i32_132] : memref<2x!tpu.dma_semaphore, #tpu.memory_space<semaphore_mem>> -> memref<1x!tpu.dma_semaphore, #tpu.memory_space<semaphore_mem>>
    %188 = tpu.memref_squeeze %187 : memref<1x!tpu.dma_semaphore, #tpu.memory_space<semaphore_mem>> -> memref<!tpu.dma_semaphore, #tpu.memory_space<semaphore_mem>>
    tpu.wait_dma2 semaphore(%188 : memref<!tpu.dma_semaphore, #tpu.memory_space<semaphore_mem>>) src(%185 : memref<1x64xf32, #tpu.memory_space<any>>) dst(%186 : memref<1x64xf32, #tpu.memory_space<vmem>>)
    %cst_136 = arith.constant 0.000000e+00 : f32
    %189 = vector.broadcast %cst_136 : f32 to vector<8x1xf32>
    %c8 = arith.constant 8 : index
    %c0_137 = arith.constant 0 : index
    %190 = vector.load %arg6[%c8, %c0_137] : memref<16x64xf32, #tpu.memory_space<vmem>>, vector<8x64xf32>
    %c0_138 = arith.constant 0 : index
    %c0_139 = arith.constant 0 : index
    %191 = vector.load %arg3[%c0_138, %c0_139] : memref<1x64xf32, #tpu.memory_space<vmem>>, vector<1x64xf32>
    %192 = vector.broadcast %191 : vector<1x64xf32> to vector<8x64xf32>
    %193 = arith.mulf %190, %192 : vector<8x64xf32>
    %cst_140 = arith.constant dense<0.000000e+00> : vector<8xf32>
    %194 = vector.multi_reduction <add>, %193, %cst_140 [1] : vector<8x64xf32> to vector<8xf32>
    %195 = vector.shape_cast %194 : vector<8xf32> to vector<8x1xf32>
    %196 = arith.addf %189, %195 : vector<8x1xf32>
    %197 = vector.broadcast %113 : vector<1x1xf32> to vector<8x1xf32>
    %198 = arith.addf %196, %197 : vector<8x1xf32>
    %c8_141 = arith.constant 8 : index
    %c0_142 = arith.constant 0 : index
    %199 = vector.load %arg5[%c8_141, %c0_142] : memref<16x1xf32, #tpu.memory_space<vmem>>, vector<8x1xf32>
    tpu.vector_store %arg5[%c8_141, %c0_142], %198 {strides = array<i32>} : memref<16x1xf32, #tpu.memory_space<vmem>>, vector<8x1xf32>,
    return
  }
  func.func @transform_1(%arg0: i32, %arg1: memref<16xi32, #tpu.memory_space<smem>>) -> (i32, i32) {
    %c0_i32 = arith.constant 0 : i32
    %c0_i32_0 = arith.constant 0 : i32
    %c0_i32_1 = arith.constant 0 : i32
    return %c0_i32, %c0_i32_0 : i32, i32
  }
  func.func @transform_2(%arg0: i32, %arg1: memref<16xi32, #tpu.memory_space<smem>>) -> (i32, i32) {
    %c0_i32 = arith.constant 0 : i32
    %c0_i32_0 = arith.constant 0 : i32
    %c0_i32_1 = arith.constant 0 : i32
    return %c0_i32, %c0_i32_0 : i32, i32
  }
  func.func @transform_3(%arg0: i32, %arg1: memref<16xi32, #tpu.memory_space<smem>>) -> (i32, i32) {
    %c0_i32 = arith.constant 0 : i32
    %c0_i32_0 = arith.constant 0 : i32
    return %arg0, %c0_i32 : i32, i32
  }
}

</mosaic_0001>

<llo_original>
// kernel: tpu_custom_call.1
$region0: #{tpu_custom_call.1}
  #allocation0 [shape = 'u32[]', space=smem, size = 0x4, offset = 0x4, fixed_abs, tag = 'smem constant byte address 0x4 - core index']
  #allocation1 [shape = 'u32[144,128]{1,0:T(1,128)}', space=vmem, size = 0x12000, scoped, tag = 'internal scratch']
  #allocation2 [shape = 'f32[16,64]{1,0:T(8,128)}', space=vmem, size = 0x2000, scoped, tag = 'scratch operand']
  #allocation3 [shape = 's32[2]{0}', space=sflag, size = 0x8, scoped, tag = 'scratch operand']
  #allocation4 [shape = 's32[1]{0}', space=sflag, size = 0x4, scoped, tag = 'scoped memory for tpu_custom_call.1']
  #allocation5 [shape = 'u8[512]{0}', space=smem, size = 0x200, scoped, tag = 'prefetched SMEM operand 0']
  #allocation6 [shape = 'f32[1,1]{1,0:T(1,128)S(1)}', space=vmem, size = 0x200, scoped, tag = 'scoped memory for tpu_custom_call.1']
  #allocation7 [shape = 's32[]', space=sflag, size = 0x4, offset = 0, fixed_abs, tag = 'sflag constant byte address 0x0 - dummy sync flag']
  #allocation8 [shape = 's32[]', space=sflag, size = 0x4, offset = 0, fixed_abs, tag = 'sflag constant byte address 0x0 - dummy sync flag']
  #allocation9 [shape = 's32[]', space=sflag, size = 0x4, offset = 0, fixed_abs, tag = 'sflag constant byte address 0x0 - dummy sync flag']
  #allocation10 [shape = 's32[]', space=sflag, size = 0x4, offset = 0, fixed_abs, tag = 'sflag constant byte address 0x0 - dummy sync flag']
  #allocation11 [shape = 's32[]', space=sflag, size = 0x4, offset = 0, fixed_abs, tag = 'sflag constant byte address 0x0 - dummy sync flag']
  #allocation12 [shape = 's32[]', space=sflag, size = 0x4, offset = 0, fixed_abs, tag = 'sflag constant byte address 0x0 - dummy sync flag']
  #allocation13 [shape = 's32[]', space=sflag, size = 0x4, offset = 0, fixed_abs, tag = 'sflag constant byte address 0x0 - dummy sync flag']
  #allocation14 [shape = 's32[]', space=sflag, size = 0x4, offset = 0, fixed_abs, tag = 'sflag constant byte address 0x0 - dummy sync flag']
  #allocation15 [shape = 's32[]', space=sflag, size = 0x4, offset = 0, fixed_abs, tag = 'sflag constant byte address 0x0 - dummy sync flag']
  #allocation16 [shape = 's32[]', space=sflag, size = 0x4, offset = 0, fixed_abs, tag = 'sflag constant byte address 0x0 - dummy sync flag']
  #allocation17 [shape = 's32[]', space=sflag, size = 0x4, offset = 0, fixed_abs, tag = 'sflag constant byte address 0x0 - dummy sync flag']
  #allocation18 [shape = 's32[]', space=sflag, size = 0x4, offset = 0, fixed_abs, tag = 'sflag constant byte address 0x0 - dummy sync flag']
  #allocation19 [shape = 's32[]', space=sflag, size = 0x4, offset = 0, fixed_abs, tag = 'sflag constant byte address 0x0 - dummy sync flag']
  #allocation20 [shape = 's32[]', space=sflag, size = 0x4, offset = 0, fixed_abs, tag = 'sflag constant byte address 0x0 - dummy sync flag']
  #allocation21 [shape = 's32[]', space=sflag, size = 0x4, offset = 0, fixed_abs, tag = 'sflag constant byte address 0x0 - dummy sync flag']
  #allocation22 [shape = 's32[]', space=sflag, size = 0x4, offset = 0, fixed_abs, tag = 'sflag constant byte address 0x0 - dummy sync flag']
  %s0 = inlined_call_operand.vmem [shape: s32[16], index: 0, kind: input, shape index: {}]
  %s1 = inlined_call_operand.vmem [shape: f32[192,64], index: 1, kind: input, shape index: {}]
  %s2 = inlined_call_operand.vmem [shape: f32[1,64], index: 2, kind: input, shape index: {}]
  %s3 = inlined_call_operand.<no memory space> [shape: f32[1,1], index: 3, kind: input, shape index: {}]
  %s4 = inlined_call_operand.vmem [shape: f32[16,1], index: 4, kind: output, shape index: {}]
  %s5 = sld [smem:[#allocation0]]
  $region498: #{tpu_custom_call.1} parent=0
    _
  %s7 = ssub.s32 1, %s5
  %s8 = scalar_select 0, %s7, %s5
  %s9 = sshll.u32 %s0, 4
  %s10 = int_to_ptr.vmem [resolvable:$true] %s9
  %12 = dma.vmem_to_smem %s10, 16, [#allocation5], [#allocation4]
  %v13 = vstv %s3
  %14 = vst [vmem:[#allocation6] sm:$0x1] %v13
  %15 = dma.done [#allocation4], 16
  %16 = sfence
  // Predicated region
  $region2: #{tpu_custom_call.1} parent=0 // pred_check
    _
  $region3: #{tpu_custom_call.1} parent=0 // pred_check_branch
    %18 = sbr.rel (0) target = $region5
  $region4: #{tpu_custom_call.1} parent=0 // pred_region
    _
  $region5: #{tpu_custom_call.1} parent=0 // pred_fallthru
    _
  // Predicated region
  $region6: #{tpu_custom_call.1} parent=0 // pred_check
    _
  $region7: #{tpu_custom_call.1} parent=0 // pred_check_branch
    %20 = sbr.rel (0) target = $region9
  $region8: #{tpu_custom_call.1} parent=0 // pred_region
    _
  $region9: #{tpu_custom_call.1} parent=0 // pred_fallthru
    _
  %s21 = smul.u32 0, 16
  %s22 = sld [smem:[#allocation5 + %s21]]
  %s23 = scalar_lea.vmem %s1, %s22
  %p25 = scmp.lt.u32.totalorder 1, 8
  %p26 = pneg %p25
  // Predicated region
  $region10: #{tpu_custom_call.1} parent=0 // pred_check
    _
  $region11: #{tpu_custom_call.1} parent=0 // pred_check_branch
    %28 = sbr.rel (%p25) target = $region13
  $region12: #{tpu_custom_call.1} parent=0 // pred_region
    %s44 = sand.u32 1, 7
    %p45 = scmp.eq.s32.totalorder %s44, 0
    %p46 = pneg %p45
    // Predicated region
    $region25: #{tpu_custom_call.1} parent=12 // pred_check
      _
    $region26: #{tpu_custom_call.1} parent=12 // pred_check_branch
      %48 = sbr.rel (%p45) target = $region28
    $region27: #{tpu_custom_call.1} parent=12 // pred_region
      %s49 = sand.u32 1, 7
      %s50 = ssub.s32 1, %s49
      %s51 = scalar_lea.vmem %s23, %s50
      %s52 = ssub.s32 1, %s49
      %s53 = scalar_lea.vmem [#allocation2], %s52
      %s54 = sshll.u32 1, %s49
      %s55 = ssub.s32 %s54, 1
      loop: start=0, step=1, limit=1
      $region29: #{tpu_custom_call.1} parent=27 // loop_pre_header
        _
      $region30: #{tpu_custom_call.1} parent=27 // loop_header
        %s57 = sphi 0, %s61
        %p58 = scmp.ge.s32.totalorder %s57, 1
        %s62 = sphi %s51, %s51
        %s63 = sphi %s53, %s53
      $region31: #{tpu_custom_call.1} parent=27 // loop_header_branch
        %60 = sbr.rel (%p58) target = $region35
      $region32: #{tpu_custom_call.1} parent=27 // loop_body
        %v64 = vld [vmem:[%s62] sm:%s55]
        %65 = vst [vmem:[%s63] sm:%s55] %v64
      $region33: #{tpu_custom_call.1} parent=27 // loop_footer
        %s61 = sadd.s32 1, %s57
      $region34: #{tpu_custom_call.1} parent=27 // loop_footer_branch
        %56 = sbr.rel target = $region30
      $region35: #{tpu_custom_call.1} parent=27 // loop_exit
        _
    $region28: #{tpu_custom_call.1} parent=12 // pred_fallthru
      _
  $region13: #{tpu_custom_call.1} parent=0 // pred_fallthru
    _
  // Predicated region
  $region14: #{tpu_custom_call.1} parent=0 // pred_check
    %p29 = pneg %p25
  $region15: #{tpu_custom_call.1} parent=0 // pred_check_branch
    %31 = sbr.rel (%p29) target = $region17
  $region16: #{tpu_custom_call.1} parent=0 // pred_region
    %s32 = sshll.u32 1, 1
    %s33 = ssub.s32 %s32, 1
    loop: start=0, step=1, limit=1
    $region18: #{tpu_custom_call.1} parent=16 // loop_pre_header
      _
    $region19: #{tpu_custom_call.1} parent=16 // loop_header
      %s35 = sphi 0, %s39
      %p36 = scmp.ge.s32.totalorder %s35, 1
      %s40 = sphi %s23, %s23
      %s41 = sphi [#allocation2], [#allocation2]
    $region20: #{tpu_custom_call.1} parent=16 // loop_header_branch
      %38 = sbr.rel (%p36) target = $region24
    $region21: #{tpu_custom_call.1} parent=16 // loop_body
      %v42 = vld [vmem:[%s40] sm:%s33]
      %43 = vst [vmem:[%s41] sm:%s33] %v42
    $region22: #{tpu_custom_call.1} parent=16 // loop_footer
      %s39 = sadd.s32 1, %s35
    $region23: #{tpu_custom_call.1} parent=16 // loop_footer_branch
      %34 = sbr.rel target = $region19
    $region24: #{tpu_custom_call.1} parent=16 // loop_exit
      _
  $region17: #{tpu_custom_call.1} parent=0 // pred_fallthru
    _
  // Predicated region
  $region36: #{tpu_custom_call.1} parent=0 // pred_check
    _
  $region37: #{tpu_custom_call.1} parent=0 // pred_check_branch
    %68 = sbr.rel (0) target = $region39
  $region38: #{tpu_custom_call.1} parent=0 // pred_region
    %69 = vsyncadd [#allocation3], 16
  $region39: #{tpu_custom_call.1} parent=0 // pred_fallthru
    _
  %s70 = sadd.s32 %s21, 1
  %s71 = sld [smem:[#allocation5 + %s70]]
  %s72 = scalar_lea.vmem %s1, %s71
  %s73 = scalar_lea.vmem [#allocation2], 1
  %p75 = scmp.lt.u32.totalorder 1, 8
  %p76 = pneg %p75
  // Predicated region
  $region40: #{tpu_custom_call.1} parent=0 // pred_check
    _
  $region41: #{tpu_custom_call.1} parent=0 // pred_check_branch
    %78 = sbr.rel (%p75) target = $region43
  $region42: #{tpu_custom_call.1} parent=0 // pred_region
    %s94 = sand.u32 1, 7
    %p95 = scmp.eq.s32.totalorder %s94, 0
    %p96 = pneg %p95
    // Predicated region
    $region55: #{tpu_custom_call.1} parent=42 // pred_check
      _
    $region56: #{tpu_custom_call.1} parent=42 // pred_check_branch
      %98 = sbr.rel (%p95) target = $region58
    $region57: #{tpu_custom_call.1} parent=42 // pred_region
      %s99 = sand.u32 1, 7
      %s100 = ssub.s32 1, %s99
      %s101 = scalar_lea.vmem %s72, %s100
      %s102 = ssub.s32 1, %s99
      %s103 = scalar_lea.vmem %s73, %s102 [#allocation2]
      %s104 = sshll.u32 1, %s99
      %s105 = ssub.s32 %s104, 1
      loop: start=0, step=1, limit=1
      $region59: #{tpu_custom_call.1} parent=57 // loop_pre_header
        _
      $region60: #{tpu_custom_call.1} parent=57 // loop_header
        %s107 = sphi 0, %s111
        %p108 = scmp.ge.s32.totalorder %s107, 1
        %s112 = sphi %s101, %s101
        %s113 = sphi %s103, %s103
      $region61: #{tpu_custom_call.1} parent=57 // loop_header_branch
        %110 = sbr.rel (%p108) target = $region65
      $region62: #{tpu_custom_call.1} parent=57 // loop_body
        %v114 = vld [vmem:[%s112] sm:%s105]
        %115 = vst [vmem:[%s113] sm:%s105] %v114
      $region63: #{tpu_custom_call.1} parent=57 // loop_footer
        %s111 = sadd.s32 1, %s107
      $region64: #{tpu_custom_call.1} parent=57 // loop_footer_branch
        %106 = sbr.rel target = $region60
      $region65: #{tpu_custom_call.1} parent=57 // loop_exit
        _
    $region58: #{tpu_custom_call.1} parent=42 // pred_fallthru
      _
  $region43: #{tpu_custom_call.1} parent=0 // pred_fallthru
    _
  // Predicated region
  $region44: #{tpu_custom_call.1} parent=0 // pred_check
    %p79 = pneg %p75
  $region45: #{tpu_custom_call.1} parent=0 // pred_check_branch
    %81 = sbr.rel (%p79) target = $region47
  $region46: #{tpu_custom_call.1} parent=0 // pred_region
    %s82 = sshll.u32 1, 1
    %s83 = ssub.s32 %s82, 1
    loop: start=0, step=1, limit=1
    $region48: #{tpu_custom_call.1} parent=46 // loop_pre_header
      _
    $region49: #{tpu_custom_call.1} parent=46 // loop_header
      %s85 = sphi 0, %s89
      %p86 = scmp.ge.s32.totalorder %s85, 1
      %s90 = sphi %s72, %s72
      %s91 = sphi %s73, %s73
    $region50: #{tpu_custom_call.1} parent=46 // loop_header_branch
      %88 = sbr.rel (%p86) target = $region54
    $region51: #{tpu_custom_call.1} parent=46 // loop_body
      %v92 = vld [vmem:[%s90] sm:%s83]
      %93 = vst [vmem:[%s91] sm:%s83] %v92
    $region52: #{tpu_custom_call.1} parent=46 // loop_footer
      %s89 = sadd.s32 1, %s85
    $region53: #{tpu_custom_call.1} parent=46 // loop_footer_branch
      %84 = sbr.rel target = $region49
    $region54: #{tpu_custom_call.1} parent=46 // loop_exit
      _
  $region47: #{tpu_custom_call.1} parent=0 // pred_fallthru
    _
  // Predicated region
  $region66: #{tpu_custom_call.1} parent=0 // pred_check
    _
  $region67: #{tpu_custom_call.1} parent=0 // pred_check_branch
    %118 = sbr.rel (0) target = $region69
  $region68: #{tpu_custom_call.1} parent=0 // pred_region
    %119 = vsyncadd [#allocation3], 16
  $region69: #{tpu_custom_call.1} parent=0 // pred_fallthru
    _
  %s120 = sadd.s32 %s21, 2
  %s121 = sld [smem:[#allocation5 + %s120]]
  %s122 = scalar_lea.vmem %s1, %s121
  %s123 = scalar_lea.vmem [#allocation2], 2
  %p125 = scmp.lt.u32.totalorder 1, 8
  %p126 = pneg %p125
  // Predicated region
  $region70: #{tpu_custom_call.1} parent=0 // pred_check
    _
  $region71: #{tpu_custom_call.1} parent=0 // pred_check_branch
    %128 = sbr.rel (%p125) target = $region73
  $region72: #{tpu_custom_call.1} parent=0 // pred_region
    %s144 = sand.u32 1, 7
    %p145 = scmp.eq.s32.totalorder %s144, 0
    %p146 = pneg %p145
    // Predicated region
    $region85: #{tpu_custom_call.1} parent=72 // pred_check
      _
    $region86: #{tpu_custom_call.1} parent=72 // pred_check_branch
      %148 = sbr.rel (%p145) target = $region88
    $region87: #{tpu_custom_call.1} parent=72 // pred_region
      %s149 = sand.u32 1, 7
      %s150 = ssub.s32 1, %s149
      %s151 = scalar_lea.vmem %s122, %s150
      %s152 = ssub.s32 1, %s149
      %s153 = scalar_lea.vmem %s123, %s152 [#allocation2]
      %s154 = sshll.u32 1, %s149
      %s155 = ssub.s32 %s154, 1
      loop: start=0, step=1, limit=1
      $region89: #{tpu_custom_call.1} parent=87 // loop_pre_header
        _
      $region90: #{tpu_custom_call.1} parent=87 // loop_header
        %s157 = sphi 0, %s161
        %p158 = scmp.ge.s32.totalorder %s157, 1
        %s162 = sphi %s151, %s151
        %s163 = sphi %s153, %s153
      $region91: #{tpu_custom_call.1} parent=87 // loop_header_branch
        %160 = sbr.rel (%p158) target = $region95
      $region92: #{tpu_custom_call.1} parent=87 // loop_body
        %v164 = vld [vmem:[%s162] sm:%s155]
        %165 = vst [vmem:[%s163] sm:%s155] %v164
      $region93: #{tpu_custom_call.1} parent=87 // loop_footer
        %s161 = sadd.s32 1, %s157
      $region94: #{tpu_custom_call.1} parent=87 // loop_footer_branch
        %156 = sbr.rel target = $region90
      $region95: #{tpu_custom_call.1} parent=87 // loop_exit
        _
    $region88: #{tpu_custom_call.1} parent=72 // pred_fallthru
      _
  $region73: #{tpu_custom_call.1} parent=0 // pred_fallthru
    _
  // Predicated region
  $region74: #{tpu_custom_call.1} parent=0 // pred_check
    %p129 = pneg %p125
  $region75: #{tpu_custom_call.1} parent=0 // pred_check_branch
    %131 = sbr.rel (%p129) target = $region77
  $region76: #{tpu_custom_call.1} parent=0 // pred_region
    %s132 = sshll.u32 1, 1
    %s133 = ssub.s32 %s132, 1
    loop: start=0, step=1, limit=1
    $region78: #{tpu_custom_call.1} parent=76 // loop_pre_header
      _
    $region79: #{tpu_custom_call.1} parent=76 // loop_header
      %s135 = sphi 0, %s139
      %p136 = scmp.ge.s32.totalorder %s135, 1
      %s140 = sphi %s122, %s122
      %s141 = sphi %s123, %s123
    $region80: #{tpu_custom_call.1} parent=76 // loop_header_branch
      %138 = sbr.rel (%p136) target = $region84
    $region81: #{tpu_custom_call.1} parent=76 // loop_body
      %v142 = vld [vmem:[%s140] sm:%s133]
      %143 = vst [vmem:[%s141] sm:%s133] %v142
    $region82: #{tpu_custom_call.1} parent=76 // loop_footer
      %s139 = sadd.s32 1, %s135
    $region83: #{tpu_custom_call.1} parent=76 // loop_footer_branch
      %134 = sbr.rel target = $region79
    $region84: #{tpu_custom_call.1} parent=76 // loop_exit
      _
  $region77: #{tpu_custom_call.1} parent=0 // pred_fallthru
    _
  // Predicated region
  $region96: #{tpu_custom_call.1} parent=0 // pred_check
    _
  $region97: #{tpu_custom_call.1} parent=0 // pred_check_branch
    %168 = sbr.rel (0) target = $region99
  $region98: #{tpu_custom_call.1} parent=0 // pred_region
    %169 = vsyncadd [#allocation3], 16
  $region99: #{tpu_custom_call.1} parent=0 // pred_fallthru
    _
  %s170 = sadd.s32 %s21, 3
  %s171 = sld [smem:[#allocation5 + %s170]]
  %s172 = scalar_lea.vmem %s1, %s171
  %s173 = scalar_lea.vmem [#allocation2], 3
  %p175 = scmp.lt.u32.totalorder 1, 8
  %p176 = pneg %p175
  // Predicated region
  $region100: #{tpu_custom_call.1} parent=0 // pred_check
    _
  $region101: #{tpu_custom_call.1} parent=0 // pred_check_branch
    %178 = sbr.rel (%p175) target = $region103
  $region102: #{tpu_custom_call.1} parent=0 // pred_region
    %s194 = sand.u32 1, 7
    %p195 = scmp.eq.s32.totalorder %s194, 0
    %p196 = pneg %p195
    // Predicated region
    $region115: #{tpu_custom_call.1} parent=102 // pred_check
      _
    $region116: #{tpu_custom_call.1} parent=102 // pred_check_branch
      %198 = sbr.rel (%p195) target = $region118
    $region117: #{tpu_custom_call.1} parent=102 // pred_region
      %s199 = sand.u32 1, 7
      %s200 = ssub.s32 1, %s199
      %s201 = scalar_lea.vmem %s172, %s200
      %s202 = ssub.s32 1, %s199
      %s203 = scalar_lea.vmem %s173, %s202 [#allocation2]
      %s204 = sshll.u32 1, %s199
      %s205 = ssub.s32 %s204, 1
      loop: start=0, step=1, limit=1
      $region119: #{tpu_custom_call.1} parent=117 // loop_pre_header
        _
      $region120: #{tpu_custom_call.1} parent=117 // loop_header
        %s207 = sphi 0, %s211
        %p208 = scmp.ge.s32.totalorder %s207, 1
        %s212 = sphi %s201, %s201
        %s213 = sphi %s203, %s203
      $region121: #{tpu_custom_call.1} parent=117 // loop_header_branch
        %210 = sbr.rel (%p208) target = $region125
      $region122: #{tpu_custom_call.1} parent=117 // loop_body
        %v214 = vld [vmem:[%s212] sm:%s205]
        %215 = vst [vmem:[%s213] sm:%s205] %v214
      $region123: #{tpu_custom_call.1} parent=117 // loop_footer
        %s211 = sadd.s32 1, %s207
      $region124: #{tpu_custom_call.1} parent=117 // loop_footer_branch
        %206 = sbr.rel target = $region120
      $region125: #{tpu_custom_call.1} parent=117 // loop_exit
        _
    $region118: #{tpu_custom_call.1} parent=102 // pred_fallthru
      _
  $region103: #{tpu_custom_call.1} parent=0 // pred_fallthru
    _
  // Predicated region
  $region104: #{tpu_custom_call.1} parent=0 // pred_check
    %p179 = pneg %p175
  $region105: #{tpu_custom_call.1} parent=0 // pred_check_branch
    %181 = sbr.rel (%p179) target = $region107
  $region106: #{tpu_custom_call.1} parent=0 // pred_region
    %s182 = sshll.u32 1, 1
    %s183 = ssub.s32 %s182, 1
    loop: start=0, step=1, limit=1
    $region108: #{tpu_custom_call.1} parent=106 // loop_pre_header
      _
    $region109: #{tpu_custom_call.1} parent=106 // loop_header
      %s185 = sphi 0, %s189
      %p186 = scmp.ge.s32.totalorder %s185, 1
      %s190 = sphi %s172, %s172
      %s191 = sphi %s173, %s173
    $region110: #{tpu_custom_call.1} parent=106 // loop_header_branch
      %188 = sbr.rel (%p186) target = $region114
    $region111: #{tpu_custom_call.1} parent=106 // loop_body
      %v192 = vld [vmem:[%s190] sm:%s183]
      %193 = vst [vmem:[%s191] sm:%s183] %v192
    $region112: #{tpu_custom_call.1} parent=106 // loop_footer
      %s189 = sadd.s32 1, %s185
    $region113: #{tpu_custom_call.1} parent=106 // loop_footer_branch
      %184 = sbr.rel target = $region109
    $region114: #{tpu_custom_call.1} parent=106 // loop_exit
      _
  $region107: #{tpu_custom_call.1} parent=0 // pred_fallthru
    _
  // Predicated region
  $region126: #{tpu_custom_call.1} parent=0 // pred_check
    _
  $region127: #{tpu_custom_call.1} parent=0 // pred_check_branch
    %218 = sbr.rel (0) target = $region129
  $region128: #{tpu_custom_call.1} parent=0 // pred_region
    %219 = vsyncadd [#allocation3], 16
  $region129: #{tpu_custom_call.1} parent=0 // pred_fallthru
    _
  %s220 = sadd.s32 %s21, 4
  %s221 = sld [smem:[#allocation5 + %s220]]
  %s222 = scalar_lea.vmem %s1, %s221
  %s223 = scalar_lea.vmem [#allocation2], 4
  %p225 = scmp.lt.u32.totalorder 1, 8
  %p226 = pneg %p225
  // Predicated region
  $region130: #{tpu_custom_call.1} parent=0 // pred_check
    _
  $region131: #{tpu_custom_call.1} parent=0 // pred_check_branch
    %228 = sbr.rel (%p225) target = $region133
  $region132: #{tpu_custom_call.1} parent=0 // pred_region
    %s244 = sand.u32 1, 7
    %p245 = scmp.eq.s32.totalorder %s244, 0
    %p246 = pneg %p245
    // Predicated region
    $region145: #{tpu_custom_call.1} parent=132 // pred_check
      _
    $region146: #{tpu_custom_call.1} parent=132 // pred_check_branch
      %248 = sbr.rel (%p245) target = $region148
    $region147: #{tpu_custom_call.1} parent=132 // pred_region
      %s249 = sand.u32 1, 7
      %s250 = ssub.s32 1, %s249
      %s251 = scalar_lea.vmem %s222, %s250
      %s252 = ssub.s32 1, %s249
      %s253 = scalar_lea.vmem %s223, %s252 [#allocation2]
      %s254 = sshll.u32 1, %s249
      %s255 = ssub.s32 %s254, 1
      loop: start=0, step=1, limit=1
      $region149: #{tpu_custom_call.1} parent=147 // loop_pre_header
        _
      $region150: #{tpu_custom_call.1} parent=147 // loop_header
        %s257 = sphi 0, %s261
        %p258 = scmp.ge.s32.totalorder %s257, 1
        %s262 = sphi %s251, %s251
        %s263 = sphi %s253, %s253
      $region151: #{tpu_custom_call.1} parent=147 // loop_header_branch
        %260 = sbr.rel (%p258) target = $region155
      $region152: #{tpu_custom_call.1} parent=147 // loop_body
        %v264 = vld [vmem:[%s262] sm:%s255]
        %265 = vst [vmem:[%s263] sm:%s255] %v264
      $region153: #{tpu_custom_call.1} parent=147 // loop_footer
        %s261 = sadd.s32 1, %s257
      $region154: #{tpu_custom_call.1} parent=147 // loop_footer_branch
        %256 = sbr.rel target = $region150
      $region155: #{tpu_custom_call.1} parent=147 // loop_exit
        _
    $region148: #{tpu_custom_call.1} parent=132 // pred_fallthru
      _
  $region133: #{tpu_custom_call.1} parent=0 // pred_fallthru
    _
  // Predicated region
  $region134: #{tpu_custom_call.1} parent=0 // pred_check
    %p229 = pneg %p225
  $region135: #{tpu_custom_call.1} parent=0 // pred_check_branch
    %231 = sbr.rel (%p229) target = $region137
  $region136: #{tpu_custom_call.1} parent=0 // pred_region
    %s232 = sshll.u32 1, 1
    %s233 = ssub.s32 %s232, 1
    loop: start=0, step=1, limit=1
    $region138: #{tpu_custom_call.1} parent=136 // loop_pre_header
      _
    $region139: #{tpu_custom_call.1} parent=136 // loop_header
      %s235 = sphi 0, %s239
      %p236 = scmp.ge.s32.totalorder %s235, 1
      %s240 = sphi %s222, %s222
      %s241 = sphi %s223, %s223
    $region140: #{tpu_custom_call.1} parent=136 // loop_header_branch
      %238 = sbr.rel (%p236) target = $region144
    $region141: #{tpu_custom_call.1} parent=136 // loop_body
      %v242 = vld [vmem:[%s240] sm:%s233]
      %243 = vst [vmem:[%s241] sm:%s233] %v242
    $region142: #{tpu_custom_call.1} parent=136 // loop_footer
      %s239 = sadd.s32 1, %s235
    $region143: #{tpu_custom_call.1} parent=136 // loop_footer_branch
      %234 = sbr.rel target = $region139
    $region144: #{tpu_custom_call.1} parent=136 // loop_exit
      _
  $region137: #{tpu_custom_call.1} parent=0 // pred_fallthru
    _
  // Predicated region
  $region156: #{tpu_custom_call.1} parent=0 // pred_check
    _
  $region157: #{tpu_custom_call.1} parent=0 // pred_check_branch
    %268 = sbr.rel (0) target = $region159
  $region158: #{tpu_custom_call.1} parent=0 // pred_region
    %269 = vsyncadd [#allocation3], 16
  $region159: #{tpu_custom_call.1} parent=0 // pred_fallthru
    _
  %s270 = sadd.s32 %s21, 5
  %s271 = sld [smem:[#allocation5 + %s270]]
  %s272 = scalar_lea.vmem %s1, %s271
  %s273 = scalar_lea.vmem [#allocation2], 5
  %p275 = scmp.lt.u32.totalorder 1, 8
  %p276 = pneg %p275
  // Predicated region
  $region160: #{tpu_custom_call.1} parent=0 // pred_check
    _
  $region161: #{tpu_custom_call.1} parent=0 // pred_check_branch
    %278 = sbr.rel (%p275) target = $region163
  $region162: #{tpu_custom_call.1} parent=0 // pred_region
    %s294 = sand.u32 1, 7
    %p295 = scmp.eq.s32.totalorder %s294, 0
    %p296 = pneg %p295
    // Predicated region
    $region175: #{tpu_custom_call.1} parent=162 // pred_check
      _
    $region176: #{tpu_custom_call.1} parent=162 // pred_check_branch
      %298 = sbr.rel (%p295) target = $region178
    $region177: #{tpu_custom_call.1} parent=162 // pred_region
      %s299 = sand.u32 1, 7
      %s300 = ssub.s32 1, %s299
      %s301 = scalar_lea.vmem %s272, %s300
      %s302 = ssub.s32 1, %s299
      %s303 = scalar_lea.vmem %s273, %s302 [#allocation2]
      %s304 = sshll.u32 1, %s299
      %s305 = ssub.s32 %s304, 1
      loop: start=0, step=1, limit=1
      $region179: #{tpu_custom_call.1} parent=177 // loop_pre_header
        _
      $region180: #{tpu_custom_call.1} parent=177 // loop_header
        %s307 = sphi 0, %s311
        %p308 = scmp.ge.s32.totalorder %s307, 1
        %s312 = sphi %s301, %s301
        %s313 = sphi %s303, %s303
      $region181: #{tpu_custom_call.1} parent=177 // loop_header_branch
        %310 = sbr.rel (%p308) target = $region185
      $region182: #{tpu_custom_call.1} parent=177 // loop_body
        %v314 = vld [vmem:[%s312] sm:%s305]
        %315 = vst [vmem:[%s313] sm:%s305] %v314
      $region183: #{tpu_custom_call.1} parent=177 // loop_footer
        %s311 = sadd.s32 1, %s307
      $region184: #{tpu_custom_call.1} parent=177 // loop_footer_branch
        %306 = sbr.rel target = $region180
      $region185: #{tpu_custom_call.1} parent=177 // loop_exit
        _
    $region178: #{tpu_custom_call.1} parent=162 // pred_fallthru
      _
  $region163: #{tpu_custom_call.1} parent=0 // pred_fallthru
    _
  // Predicated region
  $region164: #{tpu_custom_call.1} parent=0 // pred_check
    %p279 = pneg %p275
  $region165: #{tpu_custom_call.1} parent=0 // pred_check_branch
    %281 = sbr.rel (%p279) target = $region167
  $region166: #{tpu_custom_call.1} parent=0 // pred_region
    %s282 = sshll.u32 1, 1
    %s283 = ssub.s32 %s282, 1
    loop: start=0, step=1, limit=1
    $region168: #{tpu_custom_call.1} parent=166 // loop_pre_header
      _
    $region169: #{tpu_custom_call.1} parent=166 // loop_header
      %s285 = sphi 0, %s289
      %p286 = scmp.ge.s32.totalorder %s285, 1
      %s290 = sphi %s272, %s272
      %s291 = sphi %s273, %s273
    $region170: #{tpu_custom_call.1} parent=166 // loop_header_branch
      %288 = sbr.rel (%p286) target = $region174
    $region171: #{tpu_custom_call.1} parent=166 // loop_body
      %v292 = vld [vmem:[%s290] sm:%s283]
      %293 = vst [vmem:[%s291] sm:%s283] %v292
    $region172: #{tpu_custom_call.1} parent=166 // loop_footer
      %s289 = sadd.s32 1, %s285
    $region173: #{tpu_custom_call.1} parent=166 // loop_footer_branch
      %284 = sbr.rel target = $region169
    $region174: #{tpu_custom_call.1} parent=166 // loop_exit
      _
  $region167: #{tpu_custom_call.1} parent=0 // pred_fallthru
    _
  // Predicated region
  $region186: #{tpu_custom_call.1} parent=0 // pred_check
    _
  $region187: #{tpu_custom_call.1} parent=0 // pred_check_branch
    %318 = sbr.rel (0) target = $region189
  $region188: #{tpu_custom_call.1} parent=0 // pred_region
    %319 = vsyncadd [#allocation3], 16
  $region189: #{tpu_custom_call.1} parent=0 // pred_fallthru
    _
  %s320 = sadd.s32 %s21, 6
  %s321 = sld [smem:[#allocation5 + %s320]]
  %s322 = scalar_lea.vmem %s1, %s321
  %s323 = scalar_lea.vmem [#allocation2], 6
  %p325 = scmp.lt.u32.totalorder 1, 8
  %p326 = pneg %p325
  // Predicated region
  $region190: #{tpu_custom_call.1} parent=0 // pred_check
    _
  $region191: #{tpu_custom_call.1} parent=0 // pred_check_branch
    %328 = sbr.rel (%p325) target = $region193
  $region192: #{tpu_custom_call.1} parent=0 // pred_region
    %s344 = sand.u32 1, 7
    %p345 = scmp.eq.s32.totalorder %s344, 0
    %p346 = pneg %p345
    // Predicated region
    $region205: #{tpu_custom_call.1} parent=192 // pred_check
      _
    $region206: #{tpu_custom_call.1} parent=192 // pred_check_branch
      %348 = sbr.rel (%p345) target = $region208
    $region207: #{tpu_custom_call.1} parent=192 // pred_region
      %s349 = sand.u32 1, 7
      %s350 = ssub.s32 1, %s349
      %s351 = scalar_lea.vmem %s322, %s350
      %s352 = ssub.s32 1, %s349
      %s353 = scalar_lea.vmem %s323, %s352 [#allocation2]
      %s354 = sshll.u32 1, %s349
      %s355 = ssub.s32 %s354, 1
      loop: start=0, step=1, limit=1
      $region209: #{tpu_custom_call.1} parent=207 // loop_pre_header
        _
      $region210: #{tpu_custom_call.1} parent=207 // loop_header
        %s357 = sphi 0, %s361
        %p358 = scmp.ge.s32.totalorder %s357, 1
        %s362 = sphi %s351, %s351
        %s363 = sphi %s353, %s353
      $region211: #{tpu_custom_call.1} parent=207 // loop_header_branch
        %360 = sbr.rel (%p358) target = $region215
      $region212: #{tpu_custom_call.1} parent=207 // loop_body
        %v364 = vld [vmem:[%s362] sm:%s355]
        %365 = vst [vmem:[%s363] sm:%s355] %v364
      $region213: #{tpu_custom_call.1} parent=207 // loop_footer
        %s361 = sadd.s32 1, %s357
      $region214: #{tpu_custom_call.1} parent=207 // loop_footer_branch
        %356 = sbr.rel target = $region210
      $region215: #{tpu_custom_call.1} parent=207 // loop_exit
        _
    $region208: #{tpu_custom_call.1} parent=192 // pred_fallthru
      _
  $region193: #{tpu_custom_call.1} parent=0 // pred_fallthru
    _
  // Predicated region
  $region194: #{tpu_custom_call.1} parent=0 // pred_check
    %p329 = pneg %p325
  $region195: #{tpu_custom_call.1} parent=0 // pred_check_branch
    %331 = sbr.rel (%p329) target = $region197
  $region196: #{tpu_custom_call.1} parent=0 // pred_region
    %s332 = sshll.u32 1, 1
    %s333 = ssub.s32 %s332, 1
    loop: start=0, step=1, limit=1
    $region198: #{tpu_custom_call.1} parent=196 // loop_pre_header
      _
    $region199: #{tpu_custom_call.1} parent=196 // loop_header
      %s335 = sphi 0, %s339
      %p336 = scmp.ge.s32.totalorder %s335, 1
      %s340 = sphi %s322, %s322
      %s341 = sphi %s323, %s323
    $region200: #{tpu_custom_call.1} parent=196 // loop_header_branch
      %338 = sbr.rel (%p336) target = $region204
    $region201: #{tpu_custom_call.1} parent=196 // loop_body
      %v342 = vld [vmem:[%s340] sm:%s333]
      %343 = vst [vmem:[%s341] sm:%s333] %v342
    $region202: #{tpu_custom_call.1} parent=196 // loop_footer
      %s339 = sadd.s32 1, %s335
    $region203: #{tpu_custom_call.1} parent=196 // loop_footer_branch
      %334 = sbr.rel target = $region199
    $region204: #{tpu_custom_call.1} parent=196 // loop_exit
      _
  $region197: #{tpu_custom_call.1} parent=0 // pred_fallthru
    _
  // Predicated region
  $region216: #{tpu_custom_call.1} parent=0 // pred_check
    _
  $region217: #{tpu_custom_call.1} parent=0 // pred_check_branch
    %368 = sbr.rel (0) target = $region219
  $region218: #{tpu_custom_call.1} parent=0 // pred_region
    %369 = vsyncadd [#allocation3], 16
  $region219: #{tpu_custom_call.1} parent=0 // pred_fallthru
    _
  %s370 = sadd.s32 %s21, 7
  %s371 = sld [smem:[#allocation5 + %s370]]
  %s372 = scalar_lea.vmem %s1, %s371
  %s373 = scalar_lea.vmem [#allocation2], 7
  %p375 = scmp.lt.u32.totalorder 1, 8
  %p376 = pneg %p375
  // Predicated region
  $region220: #{tpu_custom_call.1} parent=0 // pred_check
    _
  $region221: #{tpu_custom_call.1} parent=0 // pred_check_branch
    %378 = sbr.rel (%p375) target = $region223
  $region222: #{tpu_custom_call.1} parent=0 // pred_region
    %s394 = sand.u32 1, 7
    %p395 = scmp.eq.s32.totalorder %s394, 0
    %p396 = pneg %p395
    // Predicated region
    $region235: #{tpu_custom_call.1} parent=222 // pred_check
      _
    $region236: #{tpu_custom_call.1} parent=222 // pred_check_branch
      %398 = sbr.rel (%p395) target = $region238
    $region237: #{tpu_custom_call.1} parent=222 // pred_region
      %s399 = sand.u32 1, 7
      %s400 = ssub.s32 1, %s399
      %s401 = scalar_lea.vmem %s372, %s400
      %s402 = ssub.s32 1, %s399
      %s403 = scalar_lea.vmem %s373, %s402 [#allocation2]
      %s404 = sshll.u32 1, %s399
      %s405 = ssub.s32 %s404, 1
      loop: start=0, step=1, limit=1
      $region239: #{tpu_custom_call.1} parent=237 // loop_pre_header
        _
      $region240: #{tpu_custom_call.1} parent=237 // loop_header
        %s407 = sphi 0, %s411
        %p408 = scmp.ge.s32.totalorder %s407, 1
        %s412 = sphi %s401, %s401
        %s413 = sphi %s403, %s403
      $region241: #{tpu_custom_call.1} parent=237 // loop_header_branch
        %410 = sbr.rel (%p408) target = $region245
      $region242: #{tpu_custom_call.1} parent=237 // loop_body
        %v414 = vld [vmem:[%s412] sm:%s405]
        %415 = vst [vmem:[%s413] sm:%s405] %v414
      $region243: #{tpu_custom_call.1} parent=237 // loop_footer
        %s411 = sadd.s32 1, %s407
      $region244: #{tpu_custom_call.1} parent=237 // loop_footer_branch
        %406 = sbr.rel target = $region240
      $region245: #{tpu_custom_call.1} parent=237 // loop_exit
        _
    $region238: #{tpu_custom_call.1} parent=222 // pred_fallthru
      _
  $region223: #{tpu_custom_call.1} parent=0 // pred_fallthru
    _
  // Predicated region
  $region224: #{tpu_custom_call.1} parent=0 // pred_check
    %p379 = pneg %p375
  $region225: #{tpu_custom_call.1} parent=0 // pred_check_branch
    %381 = sbr.rel (%p379) target = $region227
  $region226: #{tpu_custom_call.1} parent=0 // pred_region
    %s382 = sshll.u32 1, 1
    %s383 = ssub.s32 %s382, 1
    loop: start=0, step=1, limit=1
    $region228: #{tpu_custom_call.1} parent=226 // loop_pre_header
      _
    $region229: #{tpu_custom_call.1} parent=226 // loop_header
      %s385 = sphi 0, %s389
      %p386 = scmp.ge.s32.totalorder %s385, 1
      %s390 = sphi %s372, %s372
      %s391 = sphi %s373, %s373
    $region230: #{tpu_custom_call.1} parent=226 // loop_header_branch
      %388 = sbr.rel (%p386) target = $region234
    $region231: #{tpu_custom_call.1} parent=226 // loop_body
      %v392 = vld [vmem:[%s390] sm:%s383]
      %393 = vst [vmem:[%s391] sm:%s383] %v392
    $region232: #{tpu_custom_call.1} parent=226 // loop_footer
      %s389 = sadd.s32 1, %s385
    $region233: #{tpu_custom_call.1} parent=226 // loop_footer_branch
      %384 = sbr.rel target = $region229
    $region234: #{tpu_custom_call.1} parent=226 // loop_exit
      _
  $region227: #{tpu_custom_call.1} parent=0 // pred_fallthru
    _
  // Predicated region
  $region246: #{tpu_custom_call.1} parent=0 // pred_check
    _
  $region247: #{tpu_custom_call.1} parent=0 // pred_check_branch
    %418 = sbr.rel (0) target = $region249
  $region248: #{tpu_custom_call.1} parent=0 // pred_region
    %419 = vsyncadd [#allocation3], 16
  $region249: #{tpu_custom_call.1} parent=0 // pred_fallthru
    _
  %s420 = sadd.s32 %s21, 8
  %s421 = sld [smem:[#allocation5 + %s420]]
  %s422 = scalar_lea.vmem %s1, %s421
  %s423 = scalar_lea.vmem [#allocation2], 8
  %s424 = scalar_lea.sflag [#allocation3], 1
  %p426 = scmp.lt.u32.totalorder 1, 8
  %p427 = pneg %p426
  // Predicated region
  $region250: #{tpu_custom_call.1} parent=0 // pred_check
    _
  $region251: #{tpu_custom_call.1} parent=0 // pred_check_branch
    %429 = sbr.rel (%p426) target = $region253
  $region252: #{tpu_custom_call.1} parent=0 // pred_region
    %s445 = sand.u32 1, 7
    %p446 = scmp.eq.s32.totalorder %s445, 0
    %p447 = pneg %p446
    // Predicated region
    $region265: #{tpu_custom_call.1} parent=252 // pred_check
      _
    $region266: #{tpu_custom_call.1} parent=252 // pred_check_branch
      %449 = sbr.rel (%p446) target = $region268
    $region267: #{tpu_custom_call.1} parent=252 // pred_region
      %s450 = sand.u32 1, 7
      %s451 = ssub.s32 1, %s450
      %s452 = scalar_lea.vmem %s422, %s451
      %s453 = ssub.s32 1, %s450
      %s454 = scalar_lea.vmem %s423, %s453 [#allocation2]
      %s455 = sshll.u32 1, %s450
      %s456 = ssub.s32 %s455, 1
      loop: start=0, step=1, limit=1
      $region269: #{tpu_custom_call.1} parent=267 // loop_pre_header
        _
      $region270: #{tpu_custom_call.1} parent=267 // loop_header
        %s458 = sphi 0, %s462
        %p459 = scmp.ge.s32.totalorder %s458, 1
        %s463 = sphi %s452, %s452
        %s464 = sphi %s454, %s454
      $region271: #{tpu_custom_call.1} parent=267 // loop_header_branch
        %461 = sbr.rel (%p459) target = $region275
      $region272: #{tpu_custom_call.1} parent=267 // loop_body
        %v465 = vld [vmem:[%s463] sm:%s456]
        %466 = vst [vmem:[%s464] sm:%s456] %v465
      $region273: #{tpu_custom_call.1} parent=267 // loop_footer
        %s462 = sadd.s32 1, %s458
      $region274: #{tpu_custom_call.1} parent=267 // loop_footer_branch
        %457 = sbr.rel target = $region270
      $region275: #{tpu_custom_call.1} parent=267 // loop_exit
        _
    $region268: #{tpu_custom_call.1} parent=252 // pred_fallthru
      _
  $region253: #{tpu_custom_call.1} parent=0 // pred_fallthru
    _
  // Predicated region
  $region254: #{tpu_custom_call.1} parent=0 // pred_check
    %p430 = pneg %p426
  $region255: #{tpu_custom_call.1} parent=0 // pred_check_branch
    %432 = sbr.rel (%p430) target = $region257
  $region256: #{tpu_custom_call.1} parent=0 // pred_region
    %s433 = sshll.u32 1, 1
    %s434 = ssub.s32 %s433, 1
    loop: start=0, step=1, limit=1
    $region258: #{tpu_custom_call.1} parent=256 // loop_pre_header
      _
    $region259: #{tpu_custom_call.1} parent=256 // loop_header
      %s436 = sphi 0, %s440
      %p437 = scmp.ge.s32.totalorder %s436, 1
      %s441 = sphi %s422, %s422
      %s442 = sphi %s423, %s423
    $region260: #{tpu_custom_call.1} parent=256 // loop_header_branch
      %439 = sbr.rel (%p437) target = $region264
    $region261: #{tpu_custom_call.1} parent=256 // loop_body
      %v443 = vld [vmem:[%s441] sm:%s434]
      %444 = vst [vmem:[%s442] sm:%s434] %v443
    $region262: #{tpu_custom_call.1} parent=256 // loop_footer
      %s440 = sadd.s32 1, %s436
    $region263: #{tpu_custom_call.1} parent=256 // loop_footer_branch
      %435 = sbr.rel target = $region259
    $region264: #{tpu_custom_call.1} parent=256 // loop_exit
      _
  $region257: #{tpu_custom_call.1} parent=0 // pred_fallthru
    _
  // Predicated region
  $region276: #{tpu_custom_call.1} parent=0 // pred_check
    _
  $region277: #{tpu_custom_call.1} parent=0 // pred_check_branch
    %469 = sbr.rel (0) target = $region279
  $region278: #{tpu_custom_call.1} parent=0 // pred_region
    %470 = vsyncadd %s424, 16
  $region279: #{tpu_custom_call.1} parent=0 // pred_fallthru
    _
  %s471 = sadd.s32 %s21, 9
  %s472 = sld [smem:[#allocation5 + %s471]]
  %s473 = scalar_lea.vmem %s1, %s472
  %s474 = scalar_lea.vmem [#allocation2], 9
  %p476 = scmp.lt.u32.totalorder 1, 8
  %p477 = pneg %p476
  // Predicated region
  $region280: #{tpu_custom_call.1} parent=0 // pred_check
    _
  $region281: #{tpu_custom_call.1} parent=0 // pred_check_branch
    %479 = sbr.rel (%p476) target = $region283
  $region282: #{tpu_custom_call.1} parent=0 // pred_region
    %s495 = sand.u32 1, 7
    %p496 = scmp.eq.s32.totalorder %s495, 0
    %p497 = pneg %p496
    // Predicated region
    $region295: #{tpu_custom_call.1} parent=282 // pred_check
      _
    $region296: #{tpu_custom_call.1} parent=282 // pred_check_branch
      %499 = sbr.rel (%p496) target = $region298
    $region297: #{tpu_custom_call.1} parent=282 // pred_region
      %s500 = sand.u32 1, 7
      %s501 = ssub.s32 1, %s500
      %s502 = scalar_lea.vmem %s473, %s501
      %s503 = ssub.s32 1, %s500
      %s504 = scalar_lea.vmem %s474, %s503 [#allocation2]
      %s505 = sshll.u32 1, %s500
      %s506 = ssub.s32 %s505, 1
      loop: start=0, step=1, limit=1
      $region299: #{tpu_custom_call.1} parent=297 // loop_pre_header
        _
      $region300: #{tpu_custom_call.1} parent=297 // loop_header
        %s508 = sphi 0, %s512
        %p509 = scmp.ge.s32.totalorder %s508, 1
        %s513 = sphi %s502, %s502
        %s514 = sphi %s504, %s504
      $region301: #{tpu_custom_call.1} parent=297 // loop_header_branch
        %511 = sbr.rel (%p509) target = $region305
      $region302: #{tpu_custom_call.1} parent=297 // loop_body
        %v515 = vld [vmem:[%s513] sm:%s506]
        %516 = vst [vmem:[%s514] sm:%s506] %v515
      $region303: #{tpu_custom_call.1} parent=297 // loop_footer
        %s512 = sadd.s32 1, %s508
      $region304: #{tpu_custom_call.1} parent=297 // loop_footer_branch
        %507 = sbr.rel target = $region300
      $region305: #{tpu_custom_call.1} parent=297 // loop_exit
        _
    $region298: #{tpu_custom_call.1} parent=282 // pred_fallthru
      _
  $region283: #{tpu_custom_call.1} parent=0 // pred_fallthru
    _
  // Predicated region
  $region284: #{tpu_custom_call.1} parent=0 // pred_check
    %p480 = pneg %p476
  $region285: #{tpu_custom_call.1} parent=0 // pred_check_branch
    %482 = sbr.rel (%p480) target = $region287
  $region286: #{tpu_custom_call.1} parent=0 // pred_region
    %s483 = sshll.u32 1, 1
    %s484 = ssub.s32 %s483, 1
    loop: start=0, step=1, limit=1
    $region288: #{tpu_custom_call.1} parent=286 // loop_pre_header
      _
    $region289: #{tpu_custom_call.1} parent=286 // loop_header
      %s486 = sphi 0, %s490
      %p487 = scmp.ge.s32.totalorder %s486, 1
      %s491 = sphi %s473, %s473
      %s492 = sphi %s474, %s474
    $region290: #{tpu_custom_call.1} parent=286 // loop_header_branch
      %489 = sbr.rel (%p487) target = $region294
    $region291: #{tpu_custom_call.1} parent=286 // loop_body
      %v493 = vld [vmem:[%s491] sm:%s484]
      %494 = vst [vmem:[%s492] sm:%s484] %v493
    $region292: #{tpu_custom_call.1} parent=286 // loop_footer
      %s490 = sadd.s32 1, %s486
    $region293: #{tpu_custom_call.1} parent=286 // loop_footer_branch
      %485 = sbr.rel target = $region289
    $region294: #{tpu_custom_call.1} parent=286 // loop_exit
      _
  $region287: #{tpu_custom_call.1} parent=0 // pred_fallthru
    _
  // Predicated region
  $region306: #{tpu_custom_call.1} parent=0 // pred_check
    _
  $region307: #{tpu_custom_call.1} parent=0 // pred_check_branch
    %519 = sbr.rel (0) target = $region309
  $region308: #{tpu_custom_call.1} parent=0 // pred_region
    %520 = vsyncadd %s424, 16
  $region309: #{tpu_custom_call.1} parent=0 // pred_fallthru
    _
  %s521 = sadd.s32 %s21, 10
  %s522 = sld [smem:[#allocation5 + %s521]]
  %s523 = scalar_lea.vmem %s1, %s522
  %s524 = scalar_lea.vmem [#allocation2], 10
  %p526 = scmp.lt.u32.totalorder 1, 8
  %p527 = pneg %p526
  // Predicated region
  $region310: #{tpu_custom_call.1} parent=0 // pred_check
    _
  $region311: #{tpu_custom_call.1} parent=0 // pred_check_branch
    %529 = sbr.rel (%p526) target = $region313
  $region312: #{tpu_custom_call.1} parent=0 // pred_region
    %s545 = sand.u32 1, 7
    %p546 = scmp.eq.s32.totalorder %s545, 0
    %p547 = pneg %p546
    // Predicated region
    $region325: #{tpu_custom_call.1} parent=312 // pred_check
      _
    $region326: #{tpu_custom_call.1} parent=312 // pred_check_branch
      %549 = sbr.rel (%p546) target = $region328
    $region327: #{tpu_custom_call.1} parent=312 // pred_region
      %s550 = sand.u32 1, 7
      %s551 = ssub.s32 1, %s550
      %s552 = scalar_lea.vmem %s523, %s551
      %s553 = ssub.s32 1, %s550
      %s554 = scalar_lea.vmem %s524, %s553 [#allocation2]
      %s555 = sshll.u32 1, %s550
      %s556 = ssub.s32 %s555, 1
      loop: start=0, step=1, limit=1
      $region329: #{tpu_custom_call.1} parent=327 // loop_pre_header
        _
      $region330: #{tpu_custom_call.1} parent=327 // loop_header
        %s558 = sphi 0, %s562
        %p559 = scmp.ge.s32.totalorder %s558, 1
        %s563 = sphi %s552, %s552
        %s564 = sphi %s554, %s554
      $region331: #{tpu_custom_call.1} parent=327 // loop_header_branch
        %561 = sbr.rel (%p559) target = $region335
      $region332: #{tpu_custom_call.1} parent=327 // loop_body
        %v565 = vld [vmem:[%s563] sm:%s556]
        %566 = vst [vmem:[%s564] sm:%s556] %v565
      $region333: #{tpu_custom_call.1} parent=327 // loop_footer
        %s562 = sadd.s32 1, %s558
      $region334: #{tpu_custom_call.1} parent=327 // loop_footer_branch
        %557 = sbr.rel target = $region330
      $region335: #{tpu_custom_call.1} parent=327 // loop_exit
        _
    $region328: #{tpu_custom_call.1} parent=312 // pred_fallthru
      _
  $region313: #{tpu_custom_call.1} parent=0 // pred_fallthru
    _
  // Predicated region
  $region314: #{tpu_custom_call.1} parent=0 // pred_check
    %p530 = pneg %p526
  $region315: #{tpu_custom_call.1} parent=0 // pred_check_branch
    %532 = sbr.rel (%p530) target = $region317
  $region316: #{tpu_custom_call.1} parent=0 // pred_region
    %s533 = sshll.u32 1, 1
    %s534 = ssub.s32 %s533, 1
    loop: start=0, step=1, limit=1
    $region318: #{tpu_custom_call.1} parent=316 // loop_pre_header
      _
    $region319: #{tpu_custom_call.1} parent=316 // loop_header
      %s536 = sphi 0, %s540
      %p537 = scmp.ge.s32.totalorder %s536, 1
      %s541 = sphi %s523, %s523
      %s542 = sphi %s524, %s524
    $region320: #{tpu_custom_call.1} parent=316 // loop_header_branch
      %539 = sbr.rel (%p537) target = $region324
    $region321: #{tpu_custom_call.1} parent=316 // loop_body
      %v543 = vld [vmem:[%s541] sm:%s534]
      %544 = vst [vmem:[%s542] sm:%s534] %v543
    $region322: #{tpu_custom_call.1} parent=316 // loop_footer
      %s540 = sadd.s32 1, %s536
    $region323: #{tpu_custom_call.1} parent=316 // loop_footer_branch
      %535 = sbr.rel target = $region319
    $region324: #{tpu_custom_call.1} parent=316 // loop_exit
      _
  $region317: #{tpu_custom_call.1} parent=0 // pred_fallthru
    _
  // Predicated region
  $region336: #{tpu_custom_call.1} parent=0 // pred_check
    _
  $region337: #{tpu_custom_call.1} parent=0 // pred_check_branch
    %569 = sbr.rel (0) target = $region339
  $region338: #{tpu_custom_call.1} parent=0 // pred_region
    %570 = vsyncadd %s424, 16
  $region339: #{tpu_custom_call.1} parent=0 // pred_fallthru
    _
  %s571 = sadd.s32 %s21, 11
  %s572 = sld [smem:[#allocation5 + %s571]]
  %s573 = scalar_lea.vmem %s1, %s572
  %s574 = scalar_lea.vmem [#allocation2], 11
  %p576 = scmp.lt.u32.totalorder 1, 8
  %p577 = pneg %p576
  // Predicated region
  $region340: #{tpu_custom_call.1} parent=0 // pred_check
    _
  $region341: #{tpu_custom_call.1} parent=0 // pred_check_branch
    %579 = sbr.rel (%p576) target = $region343
  $region342: #{tpu_custom_call.1} parent=0 // pred_region
    %s595 = sand.u32 1, 7
    %p596 = scmp.eq.s32.totalorder %s595, 0
    %p597 = pneg %p596
    // Predicated region
    $region355: #{tpu_custom_call.1} parent=342 // pred_check
      _
    $region356: #{tpu_custom_call.1} parent=342 // pred_check_branch
      %599 = sbr.rel (%p596) target = $region358
    $region357: #{tpu_custom_call.1} parent=342 // pred_region
      %s600 = sand.u32 1, 7
      %s601 = ssub.s32 1, %s600
      %s602 = scalar_lea.vmem %s573, %s601
      %s603 = ssub.s32 1, %s600
      %s604 = scalar_lea.vmem %s574, %s603 [#allocation2]
      %s605 = sshll.u32 1, %s600
      %s606 = ssub.s32 %s605, 1
      loop: start=0, step=1, limit=1
      $region359: #{tpu_custom_call.1} parent=357 // loop_pre_header
        _
      $region360: #{tpu_custom_call.1} parent=357 // loop_header
        %s608 = sphi 0, %s612
        %p609 = scmp.ge.s32.totalorder %s608, 1
        %s613 = sphi %s602, %s602
        %s614 = sphi %s604, %s604
      $region361: #{tpu_custom_call.1} parent=357 // loop_header_branch
        %611 = sbr.rel (%p609) target = $region365
      $region362: #{tpu_custom_call.1} parent=357 // loop_body
        %v615 = vld [vmem:[%s613] sm:%s606]
        %616 = vst [vmem:[%s614] sm:%s606] %v615
      $region363: #{tpu_custom_call.1} parent=357 // loop_footer
        %s612 = sadd.s32 1, %s608
      $region364: #{tpu_custom_call.1} parent=357 // loop_footer_branch
        %607 = sbr.rel target = $region360
      $region365: #{tpu_custom_call.1} parent=357 // loop_exit
        _
    $region358: #{tpu_custom_call.1} parent=342 // pred_fallthru
      _
  $region343: #{tpu_custom_call.1} parent=0 // pred_fallthru
    _
  // Predicated region
  $region344: #{tpu_custom_call.1} parent=0 // pred_check
    %p580 = pneg %p576
  $region345: #{tpu_custom_call.1} parent=0 // pred_check_branch
    %582 = sbr.rel (%p580) target = $region347
  $region346: #{tpu_custom_call.1} parent=0 // pred_region
    %s583 = sshll.u32 1, 1
    %s584 = ssub.s32 %s583, 1
    loop: start=0, step=1, limit=1
    $region348: #{tpu_custom_call.1} parent=346 // loop_pre_header
      _
    $region349: #{tpu_custom_call.1} parent=346 // loop_header
      %s586 = sphi 0, %s590
      %p587 = scmp.ge.s32.totalorder %s586, 1
      %s591 = sphi %s573, %s573
      %s592 = sphi %s574, %s574
    $region350: #{tpu_custom_call.1} parent=346 // loop_header_branch
      %589 = sbr.rel (%p587) target = $region354
    $region351: #{tpu_custom_call.1} parent=346 // loop_body
      %v593 = vld [vmem:[%s591] sm:%s584]
      %594 = vst [vmem:[%s592] sm:%s584] %v593
    $region352: #{tpu_custom_call.1} parent=346 // loop_footer
      %s590 = sadd.s32 1, %s586
    $region353: #{tpu_custom_call.1} parent=346 // loop_footer_branch
      %585 = sbr.rel target = $region349
    $region354: #{tpu_custom_call.1} parent=346 // loop_exit
      _
  $region347: #{tpu_custom_call.1} parent=0 // pred_fallthru
    _
  // Predicated region
  $region366: #{tpu_custom_call.1} parent=0 // pred_check
    _
  $region367: #{tpu_custom_call.1} parent=0 // pred_check_branch
    %619 = sbr.rel (0) target = $region369
  $region368: #{tpu_custom_call.1} parent=0 // pred_region
    %620 = vsyncadd %s424, 16
  $region369: #{tpu_custom_call.1} parent=0 // pred_fallthru
    _
  %s621 = sadd.s32 %s21, 12
  %s622 = sld [smem:[#allocation5 + %s621]]
  %s623 = scalar_lea.vmem %s1, %s622
  %s624 = scalar_lea.vmem [#allocation2], 12
  %p626 = scmp.lt.u32.totalorder 1, 8
  %p627 = pneg %p626
  // Predicated region
  $region370: #{tpu_custom_call.1} parent=0 // pred_check
    _
  $region371: #{tpu_custom_call.1} parent=0 // pred_check_branch
    %629 = sbr.rel (%p626) target = $region373
  $region372: #{tpu_custom_call.1} parent=0 // pred_region
    %s645 = sand.u32 1, 7
    %p646 = scmp.eq.s32.totalorder %s645, 0
    %p647 = pneg %p646
    // Predicated region
    $region385: #{tpu_custom_call.1} parent=372 // pred_check
      _
    $region386: #{tpu_custom_call.1} parent=372 // pred_check_branch
      %649 = sbr.rel (%p646) target = $region388
    $region387: #{tpu_custom_call.1} parent=372 // pred_region
      %s650 = sand.u32 1, 7
      %s651 = ssub.s32 1, %s650
      %s652 = scalar_lea.vmem %s623, %s651
      %s653 = ssub.s32 1, %s650
      %s654 = scalar_lea.vmem %s624, %s653 [#allocation2]
      %s655 = sshll.u32 1, %s650
      %s656 = ssub.s32 %s655, 1
      loop: start=0, step=1, limit=1
      $region389: #{tpu_custom_call.1} parent=387 // loop_pre_header
        _
      $region390: #{tpu_custom_call.1} parent=387 // loop_header
        %s658 = sphi 0, %s662
        %p659 = scmp.ge.s32.totalorder %s658, 1
        %s663 = sphi %s652, %s652
        %s664 = sphi %s654, %s654
      $region391: #{tpu_custom_call.1} parent=387 // loop_header_branch
        %661 = sbr.rel (%p659) target = $region395
      $region392: #{tpu_custom_call.1} parent=387 // loop_body
        %v665 = vld [vmem:[%s663] sm:%s656]
        %666 = vst [vmem:[%s664] sm:%s656] %v665
      $region393: #{tpu_custom_call.1} parent=387 // loop_footer
        %s662 = sadd.s32 1, %s658
      $region394: #{tpu_custom_call.1} parent=387 // loop_footer_branch
        %657 = sbr.rel target = $region390
      $region395: #{tpu_custom_call.1} parent=387 // loop_exit
        _
    $region388: #{tpu_custom_call.1} parent=372 // pred_fallthru
      _
  $region373: #{tpu_custom_call.1} parent=0 // pred_fallthru
    _
  // Predicated region
  $region374: #{tpu_custom_call.1} parent=0 // pred_check
    %p630 = pneg %p626
  $region375: #{tpu_custom_call.1} parent=0 // pred_check_branch
    %632 = sbr.rel (%p630) target = $region377
  $region376: #{tpu_custom_call.1} parent=0 // pred_region
    %s633 = sshll.u32 1, 1
    %s634 = ssub.s32 %s633, 1
    loop: start=0, step=1, limit=1
    $region378: #{tpu_custom_call.1} parent=376 // loop_pre_header
      _
    $region379: #{tpu_custom_call.1} parent=376 // loop_header
      %s636 = sphi 0, %s640
      %p637 = scmp.ge.s32.totalorder %s636, 1
      %s641 = sphi %s623, %s623
      %s642 = sphi %s624, %s624
    $region380: #{tpu_custom_call.1} parent=376 // loop_header_branch
      %639 = sbr.rel (%p637) target = $region384
    $region381: #{tpu_custom_call.1} parent=376 // loop_body
      %v643 = vld [vmem:[%s641] sm:%s634]
      %644 = vst [vmem:[%s642] sm:%s634] %v643
    $region382: #{tpu_custom_call.1} parent=376 // loop_footer
      %s640 = sadd.s32 1, %s636
    $region383: #{tpu_custom_call.1} parent=376 // loop_footer_branch
      %635 = sbr.rel target = $region379
    $region384: #{tpu_custom_call.1} parent=376 // loop_exit
      _
  $region377: #{tpu_custom_call.1} parent=0 // pred_fallthru
    _
  // Predicated region
  $region396: #{tpu_custom_call.1} parent=0 // pred_check
    _
  $region397: #{tpu_custom_call.1} parent=0 // pred_check_branch
    %669 = sbr.rel (0) target = $region399
  $region398: #{tpu_custom_call.1} parent=0 // pred_region
    %670 = vsyncadd %s424, 16
  $region399: #{tpu_custom_call.1} parent=0 // pred_fallthru
    _
  %s671 = sadd.s32 %s21, 13
  %s672 = sld [smem:[#allocation5 + %s671]]
  %s673 = scalar_lea.vmem %s1, %s672
  %s674 = scalar_lea.vmem [#allocation2], 13
  %p676 = scmp.lt.u32.totalorder 1, 8
  %p677 = pneg %p676
  // Predicated region
  $region400: #{tpu_custom_call.1} parent=0 // pred_check
    _
  $region401: #{tpu_custom_call.1} parent=0 // pred_check_branch
    %679 = sbr.rel (%p676) target = $region403
  $region402: #{tpu_custom_call.1} parent=0 // pred_region
    %s695 = sand.u32 1, 7
    %p696 = scmp.eq.s32.totalorder %s695, 0
    %p697 = pneg %p696
    // Predicated region
    $region415: #{tpu_custom_call.1} parent=402 // pred_check
      _
    $region416: #{tpu_custom_call.1} parent=402 // pred_check_branch
      %699 = sbr.rel (%p696) target = $region418
    $region417: #{tpu_custom_call.1} parent=402 // pred_region
      %s700 = sand.u32 1, 7
      %s701 = ssub.s32 1, %s700
      %s702 = scalar_lea.vmem %s673, %s701
      %s703 = ssub.s32 1, %s700
      %s704 = scalar_lea.vmem %s674, %s703 [#allocation2]
      %s705 = sshll.u32 1, %s700
      %s706 = ssub.s32 %s705, 1
      loop: start=0, step=1, limit=1
      $region419: #{tpu_custom_call.1} parent=417 // loop_pre_header
        _
      $region420: #{tpu_custom_call.1} parent=417 // loop_header
        %s708 = sphi 0, %s712
        %p709 = scmp.ge.s32.totalorder %s708, 1
        %s713 = sphi %s702, %s702
        %s714 = sphi %s704, %s704
      $region421: #{tpu_custom_call.1} parent=417 // loop_header_branch
        %711 = sbr.rel (%p709) target = $region425
      $region422: #{tpu_custom_call.1} parent=417 // loop_body
        %v715 = vld [vmem:[%s713] sm:%s706]
        %716 = vst [vmem:[%s714] sm:%s706] %v715
      $region423: #{tpu_custom_call.1} parent=417 // loop_footer
        %s712 = sadd.s32 1, %s708
      $region424: #{tpu_custom_call.1} parent=417 // loop_footer_branch
        %707 = sbr.rel target = $region420
      $region425: #{tpu_custom_call.1} parent=417 // loop_exit
        _
    $region418: #{tpu_custom_call.1} parent=402 // pred_fallthru
      _
  $region403: #{tpu_custom_call.1} parent=0 // pred_fallthru
    _
  // Predicated region
  $region404: #{tpu_custom_call.1} parent=0 // pred_check
    %p680 = pneg %p676
  $region405: #{tpu_custom_call.1} parent=0 // pred_check_branch
    %682 = sbr.rel (%p680) target = $region407
  $region406: #{tpu_custom_call.1} parent=0 // pred_region
    %s683 = sshll.u32 1, 1
    %s684 = ssub.s32 %s683, 1
    loop: start=0, step=1, limit=1
    $region408: #{tpu_custom_call.1} parent=406 // loop_pre_header
      _
    $region409: #{tpu_custom_call.1} parent=406 // loop_header
      %s686 = sphi 0, %s690
      %p687 = scmp.ge.s32.totalorder %s686, 1
      %s691 = sphi %s673, %s673
      %s692 = sphi %s674, %s674
    $region410: #{tpu_custom_call.1} parent=406 // loop_header_branch
      %689 = sbr.rel (%p687) target = $region414
    $region411: #{tpu_custom_call.1} parent=406 // loop_body
      %v693 = vld [vmem:[%s691] sm:%s684]
      %694 = vst [vmem:[%s692] sm:%s684] %v693
    $region412: #{tpu_custom_call.1} parent=406 // loop_footer
      %s690 = sadd.s32 1, %s686
    $region413: #{tpu_custom_call.1} parent=406 // loop_footer_branch
      %685 = sbr.rel target = $region409
    $region414: #{tpu_custom_call.1} parent=406 // loop_exit
      _
  $region407: #{tpu_custom_call.1} parent=0 // pred_fallthru
    _
  // Predicated region
  $region426: #{tpu_custom_call.1} parent=0 // pred_check
    _
  $region427: #{tpu_custom_call.1} parent=0 // pred_check_branch
    %719 = sbr.rel (0) target = $region429
  $region428: #{tpu_custom_call.1} parent=0 // pred_region
    %720 = vsyncadd %s424, 16
  $region429: #{tpu_custom_call.1} parent=0 // pred_fallthru
    _
  %s721 = sadd.s32 %s21, 14
  %s722 = sld [smem:[#allocation5 + %s721]]
  %s723 = scalar_lea.vmem %s1, %s722
  %s724 = scalar_lea.vmem [#allocation2], 14
  %p726 = scmp.lt.u32.totalorder 1, 8
  %p727 = pneg %p726
  // Predicated region
  $region430: #{tpu_custom_call.1} parent=0 // pred_check
    _
  $region431: #{tpu_custom_call.1} parent=0 // pred_check_branch
    %729 = sbr.rel (%p726) target = $region433
  $region432: #{tpu_custom_call.1} parent=0 // pred_region
    %s745 = sand.u32 1, 7
    %p746 = scmp.eq.s32.totalorder %s745, 0
    %p747 = pneg %p746
    // Predicated region
    $region445: #{tpu_custom_call.1} parent=432 // pred_check
      _
    $region446: #{tpu_custom_call.1} parent=432 // pred_check_branch
      %749 = sbr.rel (%p746) target = $region448
    $region447: #{tpu_custom_call.1} parent=432 // pred_region
      %s750 = sand.u32 1, 7
      %s751 = ssub.s32 1, %s750
      %s752 = scalar_lea.vmem %s723, %s751
      %s753 = ssub.s32 1, %s750
      %s754 = scalar_lea.vmem %s724, %s753 [#allocation2]
      %s755 = sshll.u32 1, %s750
      %s756 = ssub.s32 %s755, 1
      loop: start=0, step=1, limit=1
      $region449: #{tpu_custom_call.1} parent=447 // loop_pre_header
        _
      $region450: #{tpu_custom_call.1} parent=447 // loop_header
        %s758 = sphi 0, %s762
        %p759 = scmp.ge.s32.totalorder %s758, 1
        %s763 = sphi %s752, %s752
        %s764 = sphi %s754, %s754
      $region451: #{tpu_custom_call.1} parent=447 // loop_header_branch
        %761 = sbr.rel (%p759) target = $region455
      $region452: #{tpu_custom_call.1} parent=447 // loop_body
        %v765 = vld [vmem:[%s763] sm:%s756]
        %766 = vst [vmem:[%s764] sm:%s756] %v765
      $region453: #{tpu_custom_call.1} parent=447 // loop_footer
        %s762 = sadd.s32 1, %s758
      $region454: #{tpu_custom_call.1} parent=447 // loop_footer_branch
        %757 = sbr.rel target = $region450
      $region455: #{tpu_custom_call.1} parent=447 // loop_exit
        _
    $region448: #{tpu_custom_call.1} parent=432 // pred_fallthru
      _
  $region433: #{tpu_custom_call.1} parent=0 // pred_fallthru
    _
  // Predicated region
  $region434: #{tpu_custom_call.1} parent=0 // pred_check
    %p730 = pneg %p726
  $region435: #{tpu_custom_call.1} parent=0 // pred_check_branch
    %732 = sbr.rel (%p730) target = $region437
  $region436: #{tpu_custom_call.1} parent=0 // pred_region
    %s733 = sshll.u32 1, 1
    %s734 = ssub.s32 %s733, 1
    loop: start=0, step=1, limit=1
    $region438: #{tpu_custom_call.1} parent=436 // loop_pre_header
      _
    $region439: #{tpu_custom_call.1} parent=436 // loop_header
      %s736 = sphi 0, %s740
      %p737 = scmp.ge.s32.totalorder %s736, 1
      %s741 = sphi %s723, %s723
      %s742 = sphi %s724, %s724
    $region440: #{tpu_custom_call.1} parent=436 // loop_header_branch
      %739 = sbr.rel (%p737) target = $region444
    $region441: #{tpu_custom_call.1} parent=436 // loop_body
      %v743 = vld [vmem:[%s741] sm:%s734]
      %744 = vst [vmem:[%s742] sm:%s734] %v743
    $region442: #{tpu_custom_call.1} parent=436 // loop_footer
      %s740 = sadd.s32 1, %s736
    $region443: #{tpu_custom_call.1} parent=436 // loop_footer_branch
      %735 = sbr.rel target = $region439
    $region444: #{tpu_custom_call.1} parent=436 // loop_exit
      _
  $region437: #{tpu_custom_call.1} parent=0 // pred_fallthru
    _
  // Predicated region
  $region456: #{tpu_custom_call.1} parent=0 // pred_check
    _
  $region457: #{tpu_custom_call.1} parent=0 // pred_check_branch
    %769 = sbr.rel (0) target = $region459
  $region458: #{tpu_custom_call.1} parent=0 // pred_region
    %770 = vsyncadd %s424, 16
  $region459: #{tpu_custom_call.1} parent=0 // pred_fallthru
    _
  %s771 = sadd.s32 %s21, 15
  %s772 = sld [smem:[#allocation5 + %s771]]
  %s773 = scalar_lea.vmem %s1, %s772
  %s774 = scalar_lea.vmem [#allocation2], 15
  %p776 = scmp.lt.u32.totalorder 1, 8
  %p777 = pneg %p776
  // Predicated region
  $region460: #{tpu_custom_call.1} parent=0 // pred_check
    _
  $region461: #{tpu_custom_call.1} parent=0 // pred_check_branch
    %779 = sbr.rel (%p776) target = $region463
  $region462: #{tpu_custom_call.1} parent=0 // pred_region
    %s795 = sand.u32 1, 7
    %p796 = scmp.eq.s32.totalorder %s795, 0
    %p797 = pneg %p796
    // Predicated region
    $region475: #{tpu_custom_call.1} parent=462 // pred_check
      _
    $region476: #{tpu_custom_call.1} parent=462 // pred_check_branch
      %799 = sbr.rel (%p796) target = $region478
    $region477: #{tpu_custom_call.1} parent=462 // pred_region
      %s800 = sand.u32 1, 7
      %s801 = ssub.s32 1, %s800
      %s802 = scalar_lea.vmem %s773, %s801
      %s803 = ssub.s32 1, %s800
      %s804 = scalar_lea.vmem %s774, %s803 [#allocation2]
      %s805 = sshll.u32 1, %s800
      %s806 = ssub.s32 %s805, 1
      loop: start=0, step=1, limit=1
      $region479: #{tpu_custom_call.1} parent=477 // loop_pre_header
        _
      $region480: #{tpu_custom_call.1} parent=477 // loop_header
        %s808 = sphi 0, %s812
        %p809 = scmp.ge.s32.totalorder %s808, 1
        %s813 = sphi %s802, %s802
        %s814 = sphi %s804, %s804
      $region481: #{tpu_custom_call.1} parent=477 // loop_header_branch
        %811 = sbr.rel (%p809) target = $region485
      $region482: #{tpu_custom_call.1} parent=477 // loop_body
        %v815 = vld [vmem:[%s813] sm:%s806]
        %816 = vst [vmem:[%s814] sm:%s806] %v815
      $region483: #{tpu_custom_call.1} parent=477 // loop_footer
        %s812 = sadd.s32 1, %s808
      $region484: #{tpu_custom_call.1} parent=477 // loop_footer_branch
        %807 = sbr.rel target = $region480
      $region485: #{tpu_custom_call.1} parent=477 // loop_exit
        _
    $region478: #{tpu_custom_call.1} parent=462 // pred_fallthru
      _
  $region463: #{tpu_custom_call.1} parent=0 // pred_fallthru
    _
  // Predicated region
  $region464: #{tpu_custom_call.1} parent=0 // pred_check
    %p780 = pneg %p776
  $region465: #{tpu_custom_call.1} parent=0 // pred_check_branch
    %782 = sbr.rel (%p780) target = $region467
  $region466: #{tpu_custom_call.1} parent=0 // pred_region
    %s783 = sshll.u32 1, 1
    %s784 = ssub.s32 %s783, 1
    loop: start=0, step=1, limit=1
    $region468: #{tpu_custom_call.1} parent=466 // loop_pre_header
      _
    $region469: #{tpu_custom_call.1} parent=466 // loop_header
      %s786 = sphi 0, %s790
      %p787 = scmp.ge.s32.totalorder %s786, 1
      %s791 = sphi %s773, %s773
      %s792 = sphi %s774, %s774
    $region470: #{tpu_custom_call.1} parent=466 // loop_header_branch
      %789 = sbr.rel (%p787) target = $region474
    $region471: #{tpu_custom_call.1} parent=466 // loop_body
      %v793 = vld [vmem:[%s791] sm:%s784]
      %794 = vst [vmem:[%s792] sm:%s784] %v793
    $region472: #{tpu_custom_call.1} parent=466 // loop_footer
      %s790 = sadd.s32 1, %s786
    $region473: #{tpu_custom_call.1} parent=466 // loop_footer_branch
      %785 = sbr.rel target = $region469
    $region474: #{tpu_custom_call.1} parent=466 // loop_exit
      _
  $region467: #{tpu_custom_call.1} parent=0 // pred_fallthru
    _
  // Predicated region
  $region486: #{tpu_custom_call.1} parent=0 // pred_check
    _
  $region487: #{tpu_custom_call.1} parent=0 // pred_check_branch
    %819 = sbr.rel (0) target = $region489
  $region488: #{tpu_custom_call.1} parent=0 // pred_region
    %820 = vsyncadd %s424, 16
  $region489: #{tpu_custom_call.1} parent=0 // pred_fallthru
    _
  %v821 = vld [vmem:[#allocation6] sm:$0x1]
  %s822 = smul.u32 1, 1
  %s823 = sshll.u32 %s822, 4
  %824 = dma.done [#allocation3], %s823
  %s825 = sshll.u32 %s822, 4
  %826 = dma.done [#allocation3], %s825
  %s827 = sshll.u32 %s822, 4
  %828 = dma.done [#allocation3], %s827
  %s829 = sshll.u32 %s822, 4
  %830 = dma.done [#allocation3], %s829
  %s831 = sshll.u32 %s822, 4
  %832 = dma.done [#allocation3], %s831
  %s833 = sshll.u32 %s822, 4
  %834 = dma.done [#allocation3], %s833
  %s835 = sshll.u32 %s822, 4
  %836 = dma.done [#allocation3], %s835
  %s837 = sshll.u32 %s822, 4
  %838 = dma.done [#allocation3], %s837
  %v839 = vld [vmem:[#allocation2] sm:$0xff]
  %v840 = vld [vmem:[%s2] sm:$0x1]
  %v842 = vlaneseq
  %v843 = vshrl.u32 %v842, 7
  %v844 = vsub.s32 0, %v843
  %v845 = vrot.slane %v840, %v844
  %v847 = vmul.f32 %v839, %v845
  %vm848 = vcmask 523264
  %v849 = vsel %vm848, %v847, 0.0
  %850 = vadd.xlane.f32.xlu0 %v849
  %v851 = vpop.xlane.xlu0 %850
  %v852 = vadd.f32 %v851, 0.0
  %v854 = vlaneseq
  %v855 = vshrl.u32 %v854, 7
  %v856 = vsub.s32 0, %v855
  %v857 = vrot.slane %v821, %v856
  %v859 = vadd.f32 %v852, %v857
  %vm860 = vcmask 7168
  %861 = vst.msk [vmem:[%s4] sm:$0xff] %vm860, %v859
  %s862 = sshll.u32 %s822, 4
  %863 = dma.done %s424, %s862
  %s864 = sshll.u32 %s822, 4
  %865 = dma.done %s424, %s864
  %s866 = sshll.u32 %s822, 4
  %867 = dma.done %s424, %s866
  %s868 = sshll.u32 %s822, 4
  %869 = dma.done %s424, %s868
  %s870 = sshll.u32 %s822, 4
  %871 = dma.done %s424, %s870
  %s872 = sshll.u32 %s822, 4
  %873 = dma.done %s424, %s872
  %s874 = sshll.u32 %s822, 4
  %875 = dma.done %s424, %s874
  %s876 = sshll.u32 %s822, 4
  %877 = dma.done %s424, %s876
  %v878 = vld [vmem:[#allocation2 + $0x8] sm:$0xff]
  %v879 = vld [vmem:[%s2] sm:$0x1]
  %v881 = vlaneseq
  %v882 = vshrl.u32 %v881, 7
  %v883 = vsub.s32 0, %v882
  %v884 = vrot.slane %v879, %v883
  %v886 = vmul.f32 %v878, %v884
  %v887 = vsel %vm848, %v886, 0.0
  %888 = vadd.xlane.f32.xlu0 %v887
  %v889 = vpop.xlane.xlu0 %888
  %v890 = vadd.f32 %v889, 0.0
  %v891 = vadd.f32 %v890, %v857
  %892 = vst.msk [vmem:[%s4 + $0x8] sm:$0xff] %vm860, %v891
  // Predicated region
  $region490: #{tpu_custom_call.1} parent=0 // pred_check
    _
  $region491: #{tpu_custom_call.1} parent=0 // pred_check_branch
    %894 = sbr.rel (0) target = $region493
  $region492: #{tpu_custom_call.1} parent=0 // pred_region
    _
  $region493: #{tpu_custom_call.1} parent=0 // pred_fallthru
    _
  // Predicated region
  $region494: #{tpu_custom_call.1} parent=0 // pred_check
    _
  $region495: #{tpu_custom_call.1} parent=0 // pred_check_branch
    %896 = sbr.rel (0) target = $region497
  $region496: #{tpu_custom_call.1} parent=0 // pred_region
    _
  $region497: #{tpu_custom_call.1} parent=0 // pred_fallthru
    _
  %897 = vsyncmov [#allocation3]
  %s898 = vpop.sfrf %897
  %p899 = scmp.eq.s32.totalorder %s898, 0
  %p900 = pneg %p899
  %902 = shalt.err (%p900)
  %s903 = scalar_lea.sflag [#allocation3], 1
  %904 = vsyncmov %s903
  %s905 = vpop.sfrf %904
  %p906 = scmp.eq.s32.totalorder %s905, 0
  %p907 = pneg %p906
  %909 = shalt.err (%p907)

</llo_original>
